<compile_context>
chip_gen: v6e
topology: v6e:2x2x1
jax: 0.10.0
libtpu: 0.0.40
codegen_flags: <defaults>
</compile_context>

<pallas_src>
import functools

import jax
import jax.numpy as jnp
from jax import lax
from jax.experimental import pallas as pl
from jax.experimental.pallas import tpu as pltpu

# Hyper-parameters the original file pulls from a global `tacotron_params` dict.
TACOTRON_PARAMS = {
    "seq_len_norm": False,   # MSELossMasked path (seq_len_norm=False implemented)
    "ga_iter_limit": 10000,
    "ga_alpha": 10.0,
}
POS_WEIGHT = 10.0            # BCELossMasked(pos_weight=torch.tensor(10))
GA_SIGMA = 0.05              # GuidedAttentionLoss default sigma
TILE_VMEM_BUDGET = 24 * 1024 * 1024   # double-buffered streamed tiles (v7x-safe)
# TODO(synk): seq_len_norm=True branch of MSELossMasked not implemented (param fixed to False).


def _round_up(x, m):
    return -(-x // m) * m


def _loss_kernel(mel_out_ref, mel_post_ref, mel_tgt_ref, mel_coarse_ref,
                 align_fine_ref, align_coarse_ref,
                 gate_out_ref, gate_tgt_ref, olen_vec_ref,
                 olen_ref, ilen_ref,
                 out_ref, acc_ref,
                 *, bb, tt, t_total, compute_ga, pos_weight, sigma):
    """Per-(batch-block, T-block) partial sums, accumulated in an SMEM scratch.

    acc_ref (SMEM f32[8]):
      [0] sum((mel_out     - mel_target)^2 * mask)
      [1] sum((mel_postnet - mel_target)^2 * mask)
      [2] sum((mel_coarse  - mel_target)^2 * mask)   (coarse is (B, M, T) native)
      [3] masked BCE-with-logits sum (pos_weight), PyTorch logit-masking semantics
      [4] sum |align_fine - align_coarse|
      [5] sum(ga_mask * align_fine * seq_mask)
      [6] sum(seq_mask)          (= sum_b olen_b * ilen_b, computed analytically)
      [7] unused
    At the last T step the 8 scalars are broadcast into the lane-dense
    (1, 8, 128) output block for this batch block; the wrapper reads lane 0
    and reduces over batch blocks.
    """
    b_id = pl.program_id(0)
    t_id = pl.program_id(1)
    n_t = pl.num_programs(1)
    b0 = b_id * bb           # first global batch row of this block
    t0 = t_id * tt           # first global decoder step of this block

    # ---- per-row lengths for this batch block as (BB,1,1) int columns ----
    b_iota = lax.broadcasted_iota(jnp.int32, (bb, 1, 1), 0)

    def len_col(len_ref):
        col = jnp.zeros((bb, 1, 1), jnp.int32)
        for r in range(bb):                      # bb is static & small (<= 8)
            col = jnp.where(b_iota == r, len_ref[b0 + r], col)
        return col

    olen_col = len_col(olen_ref)                 # (BB,1,1) decoder lengths
    ilen_col = len_col(ilen_ref)                 # (BB,1,1) encoder lengths

    # ---- init the accumulator on the first T step of this batch block ----
    @pl.when(t_id == 0)
    def _init():
        for k in range(8):
            acc_ref[k] = jnp.float32(0.0)

    # ---------------- masked MSE (MSELossMasked, seq_len_norm=False) ----------
    # The mask depends only on (b, t): reduce the squared diff over the mel
    # lanes first (XLU), then mask the (BB, TT, 1) row sums with jnp.where
    # (also neutralizes any grid-padding garbage in a partial last T block).
    tgt = mel_tgt_ref[...].astype(jnp.float32)                      # (BB, TT, M)
    t_row = t0 + lax.broadcasted_iota(jnp.int32, (bb, tt, 1), 1)    # global t
    row_mask = t_row < olen_col                                     # (BB, TT, 1)

    def masked_sq_sum(x_f32):
        d = x_f32 - tgt
        row = jnp.sum(d * d, axis=2, keepdims=True)                 # lane reduce
        return jnp.sum(jnp.where(row_mask, row, 0.0))

    s0 = masked_sq_sum(mel_out_ref[...].astype(jnp.float32))
    s1 = masked_sq_sum(mel_post_ref[...].astype(jnp.float32))
    # decoder-coarse mel arrives in its native (B, M, T) layout; transpose just
    # the small VMEM tile in-kernel instead of the whole tensor in HBM.
    coarse_tm = jnp.transpose(mel_coarse_ref[...].astype(jnp.float32), (0, 2, 1))
    s2 = masked_sq_sum(coarse_tm)

    # ---------------- attention L1 + guided-attention ------------------------
    af = align_fine_ref[...].astype(jnp.float32)                    # (BB, TT, Ti)
    ac = align_coarse_ref[...].astype(jnp.float32)
    l1_row = jnp.sum(jnp.abs(af - ac), axis=2, keepdims=True)       # (BB, TT, 1)
    in_bounds = t_row < t_total                                     # grid-padding guard
    s4 = jnp.sum(jnp.where(in_bounds, l1_row, 0.0))

    acc_ref[0] = acc_ref[0] + s0
    acc_ref[1] = acc_ref[1] + s1
    acc_ref[2] = acc_ref[2] + s2
    acc_ref[4] = acc_ref[4] + s4

    if compute_ga:
        ti = af.shape[2]
        ii = lax.broadcasted_iota(jnp.int32, (1, 1, ti), 2)          # encoder idx
        valid = jnp.logical_and(row_mask, ii < ilen_col)             # (BB, TT, Ti)
        inv_o = 1.0 / olen_col.astype(jnp.float32)                   # (BB,1,1)
        inv_i = 1.0 / ilen_col.astype(jnp.float32)
        r = ii.astype(jnp.float32) * inv_i - t_row.astype(jnp.float32) * inv_o
        ga = 1.0 - jnp.exp(-(r * r) * (1.0 / (2.0 * sigma * sigma)))
        s5 = jnp.sum(jnp.where(valid, ga * af, 0.0))
        # mask element count of this block is analytic: valid rows * ilen per row
        nrows = jnp.clip(olen_col - t0, 0, tt)
        s6 = jnp.sum((nrows * ilen_col).astype(jnp.float32))
        acc_ref[5] = acc_ref[5] + s5
        acc_ref[6] = acc_ref[6] + s6

    # ---------------- masked BCE-with-logits (gates), once per kernel --------
    # Gates are tiny and kept whole-resident in VMEM; compute their full sum
    # once (on the first grid step) with the lengths vector for the mask.
    @pl.when(jnp.logical_and(b_id == 0, t_id == 0))
    def _gate():
        x = gate_out_ref[...].astype(jnp.float32)                    # (B, T)
        y = gate_tgt_ref[...].astype(jnp.float32)
        tcol = lax.broadcasted_iota(jnp.int32, x.shape, 1)
        gmask = tcol < olen_vec_ref[...]                             # (B, 1) -> (B, T)
        # NOTE: PyTorch BCELossMasked masks the *logits/targets* (x*mask, y*mask)
        # before BCEWithLogits(sum); padded positions therefore contribute
        # log(2) each.  Reproduced exactly.
        xm = jnp.where(gmask, x, 0.0)
        ym = jnp.where(gmask, y, 0.0)
        shared = jnp.log1p(jnp.exp(-jnp.abs(xm)))    # shared softplus term
        bce = (pos_weight * ym * (jnp.maximum(-xm, 0.0) + shared)
               + (1.0 - ym) * (jnp.maximum(xm, 0.0) + shared))
        acc_ref[3] = acc_ref[3] + jnp.sum(bce)

    # ---------------- finalize: write lane-dense output block ----------------
    @pl.when(t_id == n_t - 1)
    def _finalize():
        out_ref[...] = jnp.concatenate(
            [jnp.broadcast_to(acc_ref[k], (1, 1, 128)) for k in range(8)], axis=1)


def tacotron2_loss(model_output, targets, input_lens, iteration):
    (mel_out, mel_out_postnet, gate_out, alignment_fine,
     mel_out_coarse, alignment_coarse, out_lengths) = model_output
    mel_target, gate_target = targets

    B, T, M = mel_out.shape
    _, To, Ti = alignment_fine.shape
    assert To == T, "alignments must have one row per decoder frame"

    # ---- tile-size selection (batch blocking + long T tiles) ----------------
    def _streamed_bytes(bb, tt):
        """Double-buffered VMEM footprint of the streamed tiles (lane-padded)."""
        mel_e = bb * _round_up(tt, 8) * _round_up(M, 128)
        coarse_e = bb * _round_up(M, 8) * _round_up(tt, 128)
        align_e = bb * _round_up(tt, 8) * _round_up(Ti, 128)
        one = (mel_e * (mel_out.dtype.itemsize + mel_out_postnet.dtype.itemsize
                        + mel_target.dtype.itemsize)
               + coarse_e * mel_out_coarse.dtype.itemsize
               + align_e * (alignment_fine.dtype.itemsize
                            + alignment_coarse.dtype.itemsize))
        return 2 * one

    # BB divides B; keep the parallel batch axis extent >= 2 (v7x has 2 TCs).
    bb_cands = [c for c in (8, 4, 2, 1) if B % c == 0 and (B < 2 or B // c >= 2)]
    # TT multiple of 128 when tiling (legal lane block for the native (B,M,T)
    # coarse tensor), else the full T.
    tt_cands = [T] if T <= 1024 else [1024, 512, 256, 128]
    combos = [(c_bb, c_tt) for c_bb in bb_cands for c_tt in tt_cands]
    fitting = [c for c in combos if _streamed_bytes(*c) <= TILE_VMEM_BUDGET]
    if fitting:
        BB, TT = min(fitting, key=lambda c: ((B // c[0]) * (-(-T // c[1])),
                                             _streamed_bytes(*c)))
    else:  # degenerate (huge Ti): take the smallest tiles and raise the limit
        BB, TT = min(combos, key=lambda c: _streamed_bytes(*c))
    n_b = B // BB
    n_t = -(-T // TT)

    # Explicit scoped-VMEM budget: streamed tiles + resident gates + outputs.
    resident = (_round_up(B, 8) * _round_up(T, 128)
                * (gate_out.dtype.itemsize + gate_target.dtype.itemsize)
                + _round_up(B, 8) * 128 * 4            # olen_vec (B,1)
                + 2 * 8 * 128 * 4)                     # output block (dbl-buffered)
    vmem_limit = int(min(max(_streamed_bytes(BB, TT) + resident + (4 << 20),
                             16 << 20), 48 << 20))

    olen = out_lengths.astype(jnp.int32)                 # (B,)
    ilen = input_lens.astype(jnp.int32)                  # (B,)
    olen_vec = olen.reshape(B, 1)                        # vector form for gate mask
    # TODO(synk): original forward does gate.view(-1, 1) before BCELossMasked, which
    # breaks the length-mask broadcasting for B>1; the intended (B, T) masking is used.

    kernel = functools.partial(
        _loss_kernel, bb=BB, tt=TT, t_total=T,
        compute_ga=bool(iteration < TACOTRON_PARAMS["ga_iter_limit"]),
        pos_weight=POS_WEIGHT, sigma=GA_SIGMA)

    vmem = pltpu.MemorySpace.VMEM
    smem = pltpu.MemorySpace.SMEM

    in_specs = [
        pl.BlockSpec((BB, TT, M), lambda b, t: (b, t, 0)),    # mel_out
        pl.BlockSpec((BB, TT, M), lambda b, t: (b, t, 0)),    # mel_out_postnet
        pl.BlockSpec((BB, TT, M), lambda b, t: (b, t, 0)),    # mel_target
        pl.BlockSpec((BB, M, TT), lambda b, t: (b, 0, t)),    # mel_out_coarse (native B,M,T)
        pl.BlockSpec((BB, TT, Ti), lambda b, t: (b, t, 0)),   # alignment_fine
        pl.BlockSpec((BB, TT, Ti), lambda b, t: (b, t, 0)),   # alignment_coarse
        pl.BlockSpec(memory_space=vmem),                      # gate_out      (whole, resident)
        pl.BlockSpec(memory_space=vmem),                      # gate_target   (whole, resident)
        pl.BlockSpec(memory_space=vmem),                      # out_lengths as (B,1) vector
        pl.BlockSpec(memory_space=smem),                      # out_lengths (scalars)
        pl.BlockSpec(memory_space=smem),                      # input_lens  (scalars)
    ]
    out_spec = pl.BlockSpec((1, 8, 128), lambda b, t: (b, 0, 0))

    partials = pl.pallas_call(
        kernel,
        grid=(n_b, n_t),
        in_specs=in_specs,
        out_specs=out_spec,
        out_shape=jax.ShapeDtypeStruct((n_b, 8, 128), jnp.float32),
        scratch_shapes=[pltpu.SMEM((8,), jnp.float32)],
        compiler_params=pltpu.CompilerParams(
            dimension_semantics=("parallel", "arbitrary"),
            vmem_limit_bytes=vmem_limit),
    )(mel_out, mel_out_postnet, mel_target, mel_out_coarse,
      alignment_fine, alignment_coarse,
      gate_out, gate_target, olen_vec, olen, ilen)

    sums = jnp.sum(partials[:, :, 0], axis=0)            # (8,) total partial sums

    # --- scalar combination (tiny, plain JAX) ---
    sum_olen = jnp.sum(olen).astype(jnp.float32)
    mel_denom = sum_olen * float(M)                      # mask.sum() after expand_as
    mel_loss = (sums[0] + sums[1]) / mel_denom
    decoder_coarse_loss = sums[2] / mel_denom
    gate_loss = sums[3] / sum_olen
    attention_loss = sums[4] / float(B * To * Ti)

    total = mel_loss + gate_loss + decoder_coarse_loss + attention_loss
    # TODO(synk): `iteration` is treated as a static Python int (as in the original
    # training loop); wrap this in lax.cond if it is ever passed as a traced value.
    if iteration < TACOTRON_PARAMS["ga_iter_limit"]:
        # TODO(synk): original code calls the GuidedAttentionLoss *constructor* with
        # (att_ws, ilens, olens); the intended GuidedAttentionLoss()(att_ws, ilens, olens)
        # with sigma=0.05 is implemented here.  A degenerate batch with
        # sum(olen*ilen)==0 yields NaN here, matching torch's empty masked mean.
        total = total + (sums[5] / sums[6]) * TACOTRON_PARAMS["ga_alpha"]
    return total


if __name__ == "__main__":
    key = jax.random.PRNGKey(0)
    B, T, M, Ti = 4, 32, 8, 8            # batch, decoder frames, mel channels, text len
    ks = jax.random.split(key, 8)

    mel_target = jax.random.normal(ks[0], (B, T, M), jnp.float32)
    mel_out = jax.random.normal(ks[1], (B, T, M), jnp.float32)
    mel_out_postnet = jax.random.normal(ks[2], (B, T, M), jnp.float32)
    mel_out_coarse = jax.random.normal(ks[3], (B, M, T), jnp.float32)   # (B, M, T) like PyTorch
    gate_out = jax.random.normal(ks[4], (B, T), jnp.float32)
    gate_target = (jax.random.uniform(ks[5], (B, T)) > 0.8).astype(jnp.float32)
    alignment_fine = jax.nn.softmax(jax.random.normal(ks[6], (B, T, Ti)), axis=-1)
    alignment_coarse = jax.nn.softmax(jax.random.normal(ks[7], (B, T, Ti)), axis=-1)
    out_lengths = jnp.array([32, 20, 10, 5], dtype=jnp.int32)   # max == T (as in training)
    input_lens = jnp.array([8, 6, 5, 3], dtype=jnp.int32)       # max == Ti
    iteration = 100

    model_output = (mel_out, mel_out_postnet, gate_out, alignment_fine,
                    mel_out_coarse, alignment_coarse, out_lengths)
    targets = (mel_target, gate_target)

    loss = tacotron2_loss(model_output, targets, input_lens, iteration)
    jax.block_until_ready(loss)
    print("KERNEL_OK")
</pallas_src>

<mosaic_0001>
module attributes {stable_mosaic.version = 11 : i64} {
  func.func @_loss_kernel(%arg0: i32, %arg1: i32, %arg2: memref<2x32x8xf32, #tpu.memory_space<vmem>>, %arg3: memref<2x32x8xf32, #tpu.memory_space<vmem>>, %arg4: memref<2x32x8xf32, #tpu.memory_space<vmem>>, %arg5: memref<2x8x32xf32, #tpu.memory_space<vmem>>, %arg6: memref<2x32x8xf32, #tpu.memory_space<vmem>>, %arg7: memref<2x32x8xf32, #tpu.memory_space<vmem>>, %arg8: memref<4x32xf32, #tpu.memory_space<vmem>>, %arg9: memref<4x32xf32, #tpu.memory_space<vmem>>, %arg10: memref<4x1xi32, #tpu.memory_space<vmem>>, %arg11: memref<4xi32, #tpu.memory_space<smem>>, %arg12: memref<4xi32, #tpu.memory_space<smem>>, %arg13: memref<1x8x128xf32, #tpu.memory_space<vmem>>, %arg14: memref<8xf32, #tpu.memory_space<smem>>) attributes {dimension_semantics = [#tpu.dimension_semantics<parallel>, #tpu.dimension_semantics<arbitrary>], iteration_bounds = array<i64: 2, 1>, scalar_prefetch = 0 : i64, scratch_operands = 1 : i64, tpu.core_type = #tpu.core_type<tc>, window_params = [{transform_indices = @transform_0, window_bounds = array<i64: 2, 32, 8>}, {transform_indices = @transform_1, window_bounds = array<i64: 2, 32, 8>}, {transform_indices = @transform_2, window_bounds = array<i64: 2, 32, 8>}, {transform_indices = @transform_3, window_bounds = array<i64: 2, 8, 32>}, {transform_indices = @transform_4, window_bounds = array<i64: 2, 32, 8>}, {transform_indices = @transform_5, window_bounds = array<i64: 2, 32, 8>}, {pipeline_mode = #tpu.pipeline_mode<synchronous>, transform_indices = @transform_6, window_bounds = array<i64: 4, 32>}, {pipeline_mode = #tpu.pipeline_mode<synchronous>, transform_indices = @transform_7, window_bounds = array<i64: 4, 32>}, {pipeline_mode = #tpu.pipeline_mode<synchronous>, transform_indices = @transform_8, window_bounds = array<i64: 4, 1>}, {transform_indices = @transform_9, window_bounds = array<i64: 4>}, {transform_indices = @transform_10, window_bounds = array<i64: 4>}, {transform_indices = @transform_11, window_bounds = array<i64: 1, 8, 128>}]} {
    %c2_i32 = arith.constant 2 : i32
    %0 = arith.muli %arg0, %c2_i32 : i32
    %c32_i32 = arith.constant 32 : i32
    %1 = arith.muli %arg1, %c32_i32 : i32
    %2 = tpu.iota {dimensions = array<i32: 0>} : vector<2x1x1xi32>
    %c0_i32 = arith.constant 0 : i32
    %3 = vector.broadcast %c0_i32 : i32 to vector<2x1x1xi32>
    %c0_i32_0 = arith.constant 0 : i32
    %4 = vector.broadcast %c0_i32_0 : i32 to vector<2x1x1xi32>
    %5 = arith.cmpi eq, %2, %4 : vector<2x1x1xi32>
    %c0_i32_1 = arith.constant 0 : i32
    %6 = arith.addi %0, %c0_i32_1 : i32
    %7 = arith.index_cast %6 : i32 to index
    %8 = memref.load %arg11[%7] : memref<4xi32, #tpu.memory_space<smem>>
    %9 = vector.broadcast %8 : i32 to vector<2x1x1xi32>
    %10 = arith.select %5, %9, %3 : vector<2x1x1xi1>, vector<2x1x1xi32>
    %c1_i32 = arith.constant 1 : i32
    %11 = vector.broadcast %c1_i32 : i32 to vector<2x1x1xi32>
    %12 = arith.cmpi eq, %2, %11 : vector<2x1x1xi32>
    %c1_i32_2 = arith.constant 1 : i32
    %13 = arith.addi %0, %c1_i32_2 : i32
    %14 = arith.index_cast %13 : i32 to index
    %15 = memref.load %arg11[%14] : memref<4xi32, #tpu.memory_space<smem>>
    %16 = vector.broadcast %15 : i32 to vector<2x1x1xi32>
    %17 = arith.select %12, %16, %10 : vector<2x1x1xi1>, vector<2x1x1xi32>
    %c0_i32_3 = arith.constant 0 : i32
    %18 = vector.broadcast %c0_i32_3 : i32 to vector<2x1x1xi32>
    %c0_i32_4 = arith.constant 0 : i32
    %19 = vector.broadcast %c0_i32_4 : i32 to vector<2x1x1xi32>
    %20 = arith.cmpi eq, %2, %19 : vector<2x1x1xi32>
    %c0_i32_5 = arith.constant 0 : i32
    %21 = arith.addi %0, %c0_i32_5 : i32
    %22 = arith.index_cast %21 : i32 to index
    %23 = memref.load %arg12[%22] : memref<4xi32, #tpu.memory_space<smem>>
    %24 = vector.broadcast %23 : i32 to vector<2x1x1xi32>
    %25 = arith.select %20, %24, %18 : vector<2x1x1xi1>, vector<2x1x1xi32>
    %c1_i32_6 = arith.constant 1 : i32
    %26 = vector.broadcast %c1_i32_6 : i32 to vector<2x1x1xi32>
    %27 = arith.cmpi eq, %2, %26 : vector<2x1x1xi32>
    %c1_i32_7 = arith.constant 1 : i32
    %28 = arith.addi %0, %c1_i32_7 : i32
    %29 = arith.index_cast %28 : i32 to index
    %30 = memref.load %arg12[%29] : memref<4xi32, #tpu.memory_space<smem>>
    %31 = vector.broadcast %30 : i32 to vector<2x1x1xi32>
    %32 = arith.select %27, %31, %25 : vector<2x1x1xi1>, vector<2x1x1xi32>
    %c0_i32_8 = arith.constant 0 : i32
    %33 = arith.cmpi eq, %arg1, %c0_i32_8 : i32
    %34 = arith.extui %33 : i1 to i32
    %c0_i32_9 = arith.constant 0 : i32
    %35 = arith.cmpi ne, %34, %c0_i32_9 : i32
    scf.if %35 {
      %cst_61 = arith.constant 0.000000e+00 : f32
      %c0_62 = arith.constant 0 : index
      %166 = memref.load %arg14[%c0_62] : memref<8xf32, #tpu.memory_space<smem>>
      memref.store %cst_61, %arg14[%c0_62] : memref<8xf32, #tpu.memory_space<smem>>
      %cst_63 = arith.constant 0.000000e+00 : f32
      %c1_64 = arith.constant 1 : index
      %167 = memref.load %arg14[%c1_64] : memref<8xf32, #tpu.memory_space<smem>>
      memref.store %cst_63, %arg14[%c1_64] : memref<8xf32, #tpu.memory_space<smem>>
      %cst_65 = arith.constant 0.000000e+00 : f32
      %c2_66 = arith.constant 2 : index
      %168 = memref.load %arg14[%c2_66] : memref<8xf32, #tpu.memory_space<smem>>
      memref.store %cst_65, %arg14[%c2_66] : memref<8xf32, #tpu.memory_space<smem>>
      %cst_67 = arith.constant 0.000000e+00 : f32
      %c3 = arith.constant 3 : index
      %169 = memref.load %arg14[%c3] : memref<8xf32, #tpu.memory_space<smem>>
      memref.store %cst_67, %arg14[%c3] : memref<8xf32, #tpu.memory_space<smem>>
      %cst_68 = arith.constant 0.000000e+00 : f32
      %c4_69 = arith.constant 4 : index
      %170 = memref.load %arg14[%c4_69] : memref<8xf32, #tpu.memory_space<smem>>
      memref.store %cst_68, %arg14[%c4_69] : memref<8xf32, #tpu.memory_space<smem>>
      %cst_70 = arith.constant 0.000000e+00 : f32
      %c5_71 = arith.constant 5 : index
      %171 = memref.load %arg14[%c5_71] : memref<8xf32, #tpu.memory_space<smem>>
      memref.store %cst_70, %arg14[%c5_71] : memref<8xf32, #tpu.memory_space<smem>>
      %cst_72 = arith.constant 0.000000e+00 : f32
      %c6_73 = arith.constant 6 : index
      %172 = memref.load %arg14[%c6_73] : memref<8xf32, #tpu.memory_space<smem>>
      memref.store %cst_72, %arg14[%c6_73] : memref<8xf32, #tpu.memory_space<smem>>
      %cst_74 = arith.constant 0.000000e+00 : f32
      %c7 = arith.constant 7 : index
      %173 = memref.load %arg14[%c7] : memref<8xf32, #tpu.memory_space<smem>>
      memref.store %cst_74, %arg14[%c7] : memref<8xf32, #tpu.memory_space<smem>>
    } else {
    }
    %c0 = arith.constant 0 : index
    %c0_10 = arith.constant 0 : index
    %c0_11 = arith.constant 0 : index
    %36 = vector.load %arg4[%c0, %c0_10, %c0_11] : memref<2x32x8xf32, #tpu.memory_space<vmem>>, vector<2x32x8xf32>
    %37 = tpu.iota {dimensions = array<i32: 1>} : vector<2x32x1xi32>
    %38 = vector.broadcast %1 : i32 to vector<2x32x1xi32>
    %39 = arith.addi %38, %37 : vector<2x32x1xi32>
    %40 = vector.broadcast %17 : vector<2x1x1xi32> to vector<2x32x1xi32>
    %41 = arith.cmpi slt, %39, %40 : vector<2x32x1xi32>
    %c0_12 = arith.constant 0 : index
    %c0_13 = arith.constant 0 : index
    %c0_14 = arith.constant 0 : index
    %42 = vector.load %arg2[%c0_12, %c0_13, %c0_14] : memref<2x32x8xf32, #tpu.memory_space<vmem>>, vector<2x32x8xf32>
    %43 = arith.subf %42, %36 : vector<2x32x8xf32>
    %44 = arith.mulf %43, %43 : vector<2x32x8xf32>
    %cst = arith.constant dense<0.000000e+00> : vector<2x32xf32>
    %45 = vector.multi_reduction <add>, %44, %cst [2] : vector<2x32x8xf32> to vector<2x32xf32>
    %46 = vector.shape_cast %45 : vector<2x32xf32> to vector<2x32x1xf32>
    %cst_15 = arith.constant 0.000000e+00 : f32
    %47 = vector.broadcast %cst_15 : f32 to vector<2x32x1xf32>
    %48 = arith.select %41, %46, %47 : vector<2x32x1xi1>, vector<2x32x1xf32>
    %49 = vector.shape_cast %48 : vector<2x32x1xf32> to vector<1x2x32x1xf32>
    %cst_16 = arith.constant dense<0.000000e+00> : vector<1xf32>
    %50 = vector.multi_reduction <add>, %49, %cst_16 [1, 2, 3] : vector<1x2x32x1xf32> to vector<1xf32>
    %51 = vector.shape_cast %50 : vector<1xf32> to vector<1x1x1x1xf32>
    %52 = vector.extract %51[0, 0, 0, 0] : f32 from vector<1x1x1x1xf32>
    %c0_17 = arith.constant 0 : index
    %c0_18 = arith.constant 0 : index
    %c0_19 = arith.constant 0 : index
    %53 = vector.load %arg3[%c0_17, %c0_18, %c0_19] : memref<2x32x8xf32, #tpu.memory_space<vmem>>, vector<2x32x8xf32>
    %54 = arith.subf %53, %36 : vector<2x32x8xf32>
    %55 = arith.mulf %54, %54 : vector<2x32x8xf32>
    %cst_20 = arith.constant dense<0.000000e+00> : vector<2x32xf32>
    %56 = vector.multi_reduction <add>, %55, %cst_20 [2] : vector<2x32x8xf32> to vector<2x32xf32>
    %57 = vector.shape_cast %56 : vector<2x32xf32> to vector<2x32x1xf32>
    %cst_21 = arith.constant 0.000000e+00 : f32
    %58 = vector.broadcast %cst_21 : f32 to vector<2x32x1xf32>
    %59 = arith.select %41, %57, %58 : vector<2x32x1xi1>, vector<2x32x1xf32>
    %60 = vector.shape_cast %59 : vector<2x32x1xf32> to vector<1x2x32x1xf32>
    %cst_22 = arith.constant dense<0.000000e+00> : vector<1xf32>
    %61 = vector.multi_reduction <add>, %60, %cst_22 [1, 2, 3] : vector<1x2x32x1xf32> to vector<1xf32>
    %62 = vector.shape_cast %61 : vector<1xf32> to vector<1x1x1x1xf32>
    %63 = vector.extract %62[0, 0, 0, 0] : f32 from vector<1x1x1x1xf32>
    %c0_23 = arith.constant 0 : index
    %c0_24 = arith.constant 0 : index
    %c0_25 = arith.constant 0 : index
    %64 = vector.load %arg5[%c0_23, %c0_24, %c0_25] : memref<2x8x32xf32, #tpu.memory_space<vmem>>, vector<2x8x32xf32>
    %65 = tpu.transpose %64, [0, 2, 1] : vector<2x8x32xf32> -> vector<2x32x8xf32>
    %66 = arith.subf %65, %36 : vector<2x32x8xf32>
    %67 = arith.mulf %66, %66 : vector<2x32x8xf32>
    %cst_26 = arith.constant dense<0.000000e+00> : vector<2x32xf32>
    %68 = vector.multi_reduction <add>, %67, %cst_26 [2] : vector<2x32x8xf32> to vector<2x32xf32>
    %69 = vector.shape_cast %68 : vector<2x32xf32> to vector<2x32x1xf32>
    %cst_27 = arith.constant 0.000000e+00 : f32
    %70 = vector.broadcast %cst_27 : f32 to vector<2x32x1xf32>
    %71 = arith.select %41, %69, %70 : vector<2x32x1xi1>, vector<2x32x1xf32>
    %72 = vector.shape_cast %71 : vector<2x32x1xf32> to vector<1x2x32x1xf32>
    %cst_28 = arith.constant dense<0.000000e+00> : vector<1xf32>
    %73 = vector.multi_reduction <add>, %72, %cst_28 [1, 2, 3] : vector<1x2x32x1xf32> to vector<1xf32>
    %74 = vector.shape_cast %73 : vector<1xf32> to vector<1x1x1x1xf32>
    %75 = vector.extract %74[0, 0, 0, 0] : f32 from vector<1x1x1x1xf32>
    %c0_29 = arith.constant 0 : index
    %c0_30 = arith.constant 0 : index
    %c0_31 = arith.constant 0 : index
    %76 = vector.load %arg6[%c0_29, %c0_30, %c0_31] : memref<2x32x8xf32, #tpu.memory_space<vmem>>, vector<2x32x8xf32>
    %c0_32 = arith.constant 0 : index
    %c0_33 = arith.constant 0 : index
    %c0_34 = arith.constant 0 : index
    %77 = vector.load %arg7[%c0_32, %c0_33, %c0_34] : memref<2x32x8xf32, #tpu.memory_space<vmem>>, vector<2x32x8xf32>
    %78 = arith.subf %76, %77 : vector<2x32x8xf32>
    %79 = math.absf %78 : vector<2x32x8xf32>
    %cst_35 = arith.constant dense<0.000000e+00> : vector<2x32xf32>
    %80 = vector.multi_reduction <add>, %79, %cst_35 [2] : vector<2x32x8xf32> to vector<2x32xf32>
    %81 = vector.shape_cast %80 : vector<2x32xf32> to vector<2x32x1xf32>
    %c32_i32_36 = arith.constant 32 : i32
    %82 = vector.broadcast %c32_i32_36 : i32 to vector<2x32x1xi32>
    %83 = arith.cmpi slt, %39, %82 : vector<2x32x1xi32>
    %cst_37 = arith.constant 0.000000e+00 : f32
    %84 = vector.broadcast %cst_37 : f32 to vector<2x32x1xf32>
    %85 = arith.select %83, %81, %84 : vector<2x32x1xi1>, vector<2x32x1xf32>
    %86 = vector.shape_cast %85 : vector<2x32x1xf32> to vector<1x2x32x1xf32>
    %cst_38 = arith.constant dense<0.000000e+00> : vector<1xf32>
    %87 = vector.multi_reduction <add>, %86, %cst_38 [1, 2, 3] : vector<1x2x32x1xf32> to vector<1xf32>
    %88 = vector.shape_cast %87 : vector<1xf32> to vector<1x1x1x1xf32>
    %89 = vector.extract %88[0, 0, 0, 0] : f32 from vector<1x1x1x1xf32>
    %c0_39 = arith.constant 0 : index
    %90 = memref.load %arg14[%c0_39] : memref<8xf32, #tpu.memory_space<smem>>
    %91 = arith.addf %90, %52 : f32
    %c0_40 = arith.constant 0 : index
    %92 = memref.load %arg14[%c0_40] : memref<8xf32, #tpu.memory_space<smem>>
    memref.store %91, %arg14[%c0_40] : memref<8xf32, #tpu.memory_space<smem>>
    %c1 = arith.constant 1 : index
    %93 = memref.load %arg14[%c1] : memref<8xf32, #tpu.memory_space<smem>>
    %94 = arith.addf %93, %63 : f32
    %c1_41 = arith.constant 1 : index
    %95 = memref.load %arg14[%c1_41] : memref<8xf32, #tpu.memory_space<smem>>
    memref.store %94, %arg14[%c1_41] : memref<8xf32, #tpu.memory_space<smem>>
    %c2 = arith.constant 2 : index
    %96 = memref.load %arg14[%c2] : memref<8xf32, #tpu.memory_space<smem>>
    %97 = arith.addf %96, %75 : f32
    %c2_42 = arith.constant 2 : index
    %98 = memref.load %arg14[%c2_42] : memref<8xf32, #tpu.memory_space<smem>>
    memref.store %97, %arg14[%c2_42] : memref<8xf32, #tpu.memory_space<smem>>
    %c4 = arith.constant 4 : index
    %99 = memref.load %arg14[%c4] : memref<8xf32, #tpu.memory_space<smem>>
    %100 = arith.addf %99, %89 : f32
    %c4_43 = arith.constant 4 : index
    %101 = memref.load %arg14[%c4_43] : memref<8xf32, #tpu.memory_space<smem>>
    memref.store %100, %arg14[%c4_43] : memref<8xf32, #tpu.memory_space<smem>>
    %102 = tpu.iota {dimensions = array<i32: 2>} : vector<1x1x8xi32>
    %103 = vector.broadcast %102 : vector<1x1x8xi32> to vector<2x1x8xi32>
    %104 = vector.broadcast %32 : vector<2x1x1xi32> to vector<2x1x8xi32>
    %105 = arith.cmpi slt, %103, %104 : vector<2x1x8xi32>
    %106 = vector.broadcast %41 : vector<2x32x1xi1> to vector<2x32x8xi1>
    %107 = vector.broadcast %105 : vector<2x1x8xi1> to vector<2x32x8xi1>
    %108 = arith.andi %106, %107 : vector<2x32x8xi1>
    %109 = arith.sitofp %17 : vector<2x1x1xi32> to vector<2x1x1xf32>
    %cst_44 = arith.constant 1.000000e+00 : f32
    %110 = vector.broadcast %cst_44 : f32 to vector<2x1x1xf32>
    %111 = arith.divf %110, %109 : vector<2x1x1xf32>
    %112 = arith.sitofp %32 : vector<2x1x1xi32> to vector<2x1x1xf32>
    %cst_45 = arith.constant 1.000000e+00 : f32
    %113 = vector.broadcast %cst_45 : f32 to vector<2x1x1xf32>
    %114 = arith.divf %113, %112 : vector<2x1x1xf32>
    %115 = arith.sitofp %102 : vector<1x1x8xi32> to vector<1x1x8xf32>
    %116 = vector.broadcast %115 : vector<1x1x8xf32> to vector<2x1x8xf32>
    %117 = vector.broadcast %114 : vector<2x1x1xf32> to vector<2x1x8xf32>
    %118 = arith.mulf %116, %117 : vector<2x1x8xf32>
    %119 = arith.sitofp %39 : vector<2x32x1xi32> to vector<2x32x1xf32>
    %120 = vector.broadcast %111 : vector<2x1x1xf32> to vector<2x32x1xf32>
    %121 = arith.mulf %119, %120 : vector<2x32x1xf32>
    %122 = vector.broadcast %118 : vector<2x1x8xf32> to vector<2x32x8xf32>
    %123 = vector.broadcast %121 : vector<2x32x1xf32> to vector<2x32x8xf32>
    %124 = arith.subf %122, %123 : vector<2x32x8xf32>
    %125 = arith.mulf %124, %124 : vector<2x32x8xf32>
    %cst_46 = arith.constant 0.000000e+00 : f32
    %126 = vector.broadcast %cst_46 : f32 to vector<2x32x8xf32>
    %127 = arith.subf %126, %125 : vector<2x32x8xf32>
    %cst_47 = arith.constant 2.000000e+02 : f32
    %128 = vector.broadcast %cst_47 : f32 to vector<2x32x8xf32>
    %129 = arith.mulf %127, %128 : vector<2x32x8xf32>
    %130 = math.exp %129 : vector<2x32x8xf32>
    %cst_48 = arith.constant 1.000000e+00 : f32
    %131 = vector.broadcast %cst_48 : f32 to vector<2x32x8xf32>
    %132 = arith.subf %131, %130 : vector<2x32x8xf32>
    %133 = arith.mulf %132, %76 : vector<2x32x8xf32>
    %cst_49 = arith.constant 0.000000e+00 : f32
    %134 = vector.broadcast %cst_49 : f32 to vector<2x32x8xf32>
    %135 = arith.select %108, %133, %134 : vector<2x32x8xi1>, vector<2x32x8xf32>
    %136 = vector.shape_cast %135 : vector<2x32x8xf32> to vector<1x2x32x8xf32>
    %cst_50 = arith.constant dense<0.000000e+00> : vector<1xf32>
    %137 = vector.multi_reduction <add>, %136, %cst_50 [1, 2, 3] : vector<1x2x32x8xf32> to vector<1xf32>
    %138 = vector.shape_cast %137 : vector<1xf32> to vector<1x1x1x1xf32>
    %139 = vector.extract %138[0, 0, 0, 0] : f32 from vector<1x1x1x1xf32>
    %140 = vector.broadcast %1 : i32 to vector<2x1x1xi32>
    %141 = arith.subi %17, %140 : vector<2x1x1xi32>
    %c0_i32_51 = arith.constant 0 : i32
    %c32_i32_52 = arith.constant 32 : i32
    %142 = vector.broadcast %c0_i32_51 : i32 to vector<2x1x1xi32>
    %143 = arith.maxsi %142, %141 : vector<2x1x1xi32>
    %144 = vector.broadcast %c32_i32_52 : i32 to vector<2x1x1xi32>
    %145 = arith.minsi %144, %143 : vector<2x1x1xi32>
    %146 = arith.muli %145, %32 : vector<2x1x1xi32>
    %147 = arith.sitofp %146 : vector<2x1x1xi32> to vector<2x1x1xf32>
    %148 = vector.shape_cast %147 : vector<2x1x1xf32> to vector<1x2x1x1xf32>
    %cst_53 = arith.constant dense<0.000000e+00> : vector<1xf32>
    %149 = vector.multi_reduction <add>, %148, %cst_53 [1, 2, 3] : vector<1x2x1x1xf32> to vector<1xf32>
    %150 = vector.shape_cast %149 : vector<1xf32> to vector<1x1x1x1xf32>
    %151 = vector.extract %150[0, 0, 0, 0] : f32 from vector<1x1x1x1xf32>
    %c5 = arith.constant 5 : index
    %152 = memref.load %arg14[%c5] : memref<8xf32, #tpu.memory_space<smem>>
    %153 = arith.addf %152, %139 : f32
    %c5_54 = arith.constant 5 : index
    %154 = memref.load %arg14[%c5_54] : memref<8xf32, #tpu.memory_space<smem>>
    memref.store %153, %arg14[%c5_54] : memref<8xf32, #tpu.memory_space<smem>>
    %c6 = arith.constant 6 : index
    %155 = memref.load %arg14[%c6] : memref<8xf32, #tpu.memory_space<smem>>
    %156 = arith.addf %155, %151 : f32
    %c6_55 = arith.constant 6 : index
    %157 = memref.load %arg14[%c6_55] : memref<8xf32, #tpu.memory_space<smem>>
    memref.store %156, %arg14[%c6_55] : memref<8xf32, #tpu.memory_space<smem>>
    %c0_i32_56 = arith.constant 0 : i32
    %158 = arith.cmpi eq, %arg0, %c0_i32_56 : i32
    %c0_i32_57 = arith.constant 0 : i32
    %159 = arith.cmpi eq, %arg1, %c0_i32_57 : i32
    %160 = arith.andi %158, %159 : i1
    %161 = arith.extui %160 : i1 to i32
    %c0_i32_58 = arith.constant 0 : i32
    %162 = arith.cmpi ne, %161, %c0_i32_58 : i32
    scf.if %162 {
      %c0_61 = arith.constant 0 : index
      %c0_62 = arith.constant 0 : index
      %166 = vector.load %arg8[%c0_61, %c0_62] : memref<4x32xf32, #tpu.memory_space<vmem>>, vector<4x32xf32>
      %c0_63 = arith.constant 0 : index
      %c0_64 = arith.constant 0 : index
      %167 = vector.load %arg9[%c0_63, %c0_64] : memref<4x32xf32, #tpu.memory_space<vmem>>, vector<4x32xf32>
      %168 = tpu.iota {dimensions = array<i32: 1>} : vector<4x32xi32>
      %c0_65 = arith.constant 0 : index
      %c0_66 = arith.constant 0 : index
      %169 = vector.load %arg10[%c0_65, %c0_66] : memref<4x1xi32, #tpu.memory_space<vmem>>, vector<4x1xi32>
      %170 = vector.broadcast %169 : vector<4x1xi32> to vector<4x32xi32>
      %171 = arith.cmpi slt, %168, %170 : vector<4x32xi32>
      %cst_67 = arith.constant 0.000000e+00 : f32
      %172 = vector.broadcast %cst_67 : f32 to vector<4x32xf32>
      %173 = arith.select %171, %166, %172 : vector<4x32xi1>, vector<4x32xf32>
      %cst_68 = arith.constant 0.000000e+00 : f32
      %174 = vector.broadcast %cst_68 : f32 to vector<4x32xf32>
      %175 = arith.select %171, %167, %174 : vector<4x32xi1>, vector<4x32xf32>
      %176 = math.absf %173 : vector<4x32xf32>
      %cst_69 = arith.constant 0.000000e+00 : f32
      %177 = vector.broadcast %cst_69 : f32 to vector<4x32xf32>
      %178 = arith.subf %177, %176 : vector<4x32xf32>
      %179 = math.exp %178 : vector<4x32xf32>
      %180 = math.log1p %179 : vector<4x32xf32>
      %cst_70 = arith.constant 1.000000e+01 : f32
      %181 = vector.broadcast %cst_70 : f32 to vector<4x32xf32>
      %182 = arith.mulf %181, %175 : vector<4x32xf32>
      %cst_71 = arith.constant 0.000000e+00 : f32
      %183 = vector.broadcast %cst_71 : f32 to vector<4x32xf32>
      %184 = arith.subf %183, %173 : vector<4x32xf32>
      %cst_72 = arith.constant 0.000000e+00 : f32
      %185 = vector.broadcast %cst_72 : f32 to vector<4x32xf32>
      %186 = arith.maximumf %184, %185 : vector<4x32xf32>
      %187 = arith.addf %186, %180 : vector<4x32xf32>
      %188 = arith.mulf %182, %187 : vector<4x32xf32>
      %cst_73 = arith.constant 1.000000e+00 : f32
      %189 = vector.broadcast %cst_73 : f32 to vector<4x32xf32>
      %190 = arith.subf %189, %175 : vector<4x32xf32>
      %cst_74 = arith.constant 0.000000e+00 : f32
      %191 = vector.broadcast %cst_74 : f32 to vector<4x32xf32>
      %192 = arith.maximumf %173, %191 : vector<4x32xf32>
      %193 = arith.addf %192, %180 : vector<4x32xf32>
      %194 = arith.mulf %190, %193 : vector<4x32xf32>
      %195 = arith.addf %188, %194 : vector<4x32xf32>
      %c3 = arith.constant 3 : index
      %196 = memref.load %arg14[%c3] : memref<8xf32, #tpu.memory_space<smem>>
      %197 = vector.shape_cast %195 : vector<4x32xf32> to vector<1x4x32xf32>
      %cst_75 = arith.constant dense<0.000000e+00> : vector<1xf32>
      %198 = vector.multi_reduction <add>, %197, %cst_75 [1, 2] : vector<1x4x32xf32> to vector<1xf32>
      %199 = vector.shape_cast %198 : vector<1xf32> to vector<1x1x1xf32>
      %200 = vector.extract %199[0, 0, 0] : f32 from vector<1x1x1xf32>
      %201 = arith.addf %196, %200 : f32
      %c3_76 = arith.constant 3 : index
      %202 = memref.load %arg14[%c3_76] : memref<8xf32, #tpu.memory_space<smem>>
      memref.store %201, %arg14[%c3_76] : memref<8xf32, #tpu.memory_space<smem>>
    } else {
    }
    %c0_i32_59 = arith.constant 0 : i32
    %163 = arith.cmpi eq, %arg1, %c0_i32_59 : i32
    %164 = arith.extui %163 : i1 to i32
    %c0_i32_60 = arith.constant 0 : i32
    %165 = arith.cmpi ne, %164, %c0_i32_60 : i32
    scf.if %165 {
      %c0_61 = arith.constant 0 : index
      %166 = memref.load %arg14[%c0_61] : memref<8xf32, #tpu.memory_space<smem>>
      %167 = vector.broadcast %166 : f32 to vector<1x1x128xf32>
      %c1_62 = arith.constant 1 : index
      %168 = memref.load %arg14[%c1_62] : memref<8xf32, #tpu.memory_space<smem>>
      %169 = vector.broadcast %168 : f32 to vector<1x1x128xf32>
      %c2_63 = arith.constant 2 : index
      %170 = memref.load %arg14[%c2_63] : memref<8xf32, #tpu.memory_space<smem>>
      %171 = vector.broadcast %170 : f32 to vector<1x1x128xf32>
      %c3 = arith.constant 3 : index
      %172 = memref.load %arg14[%c3] : memref<8xf32, #tpu.memory_space<smem>>
      %173 = vector.broadcast %172 : f32 to vector<1x1x128xf32>
      %c4_64 = arith.constant 4 : index
      %174 = memref.load %arg14[%c4_64] : memref<8xf32, #tpu.memory_space<smem>>
      %175 = vector.broadcast %174 : f32 to vector<1x1x128xf32>
      %c5_65 = arith.constant 5 : index
      %176 = memref.load %arg14[%c5_65] : memref<8xf32, #tpu.memory_space<smem>>
      %177 = vector.broadcast %176 : f32 to vector<1x1x128xf32>
      %c6_66 = arith.constant 6 : index
      %178 = memref.load %arg14[%c6_66] : memref<8xf32, #tpu.memory_space<smem>>
      %179 = vector.broadcast %178 : f32 to vector<1x1x128xf32>
      %c7 = arith.constant 7 : index
      %180 = memref.load %arg14[%c7] : memref<8xf32, #tpu.memory_space<smem>>
      %181 = vector.broadcast %180 : f32 to vector<1x1x128xf32>
      %182 = tpu.concatenate %167, %169, %171, %173, %175, %177, %179, %181 in 1 : vector<1x1x128xf32>, vector<1x1x128xf32>, vector<1x1x128xf32>, vector<1x1x128xf32>, vector<1x1x128xf32>, vector<1x1x128xf32>, vector<1x1x128xf32>, vector<1x1x128xf32> -> vector<1x8x128xf32>
      %c0_67 = arith.constant 0 : index
      %c0_68 = arith.constant 0 : index
      %c0_69 = arith.constant 0 : index
      %183 = vector.load %arg13[%c0_67, %c0_68, %c0_69] : memref<1x8x128xf32, #tpu.memory_space<vmem>>, vector<1x8x128xf32>
      tpu.vector_store %arg13[%c0_67, %c0_68, %c0_69], %182 {strides = array<i32>} : memref<1x8x128xf32, #tpu.memory_space<vmem>>, vector<1x8x128xf32>,
    } else {
    }
    return
  }
  func.func @transform_0(%arg0: i32, %arg1: i32) -> (i32, i32, i32) {
    %c0_i32 = arith.constant 0 : i32
    %c0_i32_0 = arith.constant 0 : i32
    return %arg0, %arg1, %c0_i32 : i32, i32, i32
  }
  func.func @transform_1(%arg0: i32, %arg1: i32) -> (i32, i32, i32) {
    %c0_i32 = arith.constant 0 : i32
    %c0_i32_0 = arith.constant 0 : i32
    return %arg0, %arg1, %c0_i32 : i32, i32, i32
  }
  func.func @transform_2(%arg0: i32, %arg1: i32) -> (i32, i32, i32) {
    %c0_i32 = arith.constant 0 : i32
    %c0_i32_0 = arith.constant 0 : i32
    return %arg0, %arg1, %c0_i32 : i32, i32, i32
  }
  func.func @transform_3(%arg0: i32, %arg1: i32) -> (i32, i32, i32) {
    %c0_i32 = arith.constant 0 : i32
    %c0_i32_0 = arith.constant 0 : i32
    return %arg0, %c0_i32, %arg1 : i32, i32, i32
  }
  func.func @transform_4(%arg0: i32, %arg1: i32) -> (i32, i32, i32) {
    %c0_i32 = arith.constant 0 : i32
    %c0_i32_0 = arith.constant 0 : i32
    return %arg0, %arg1, %c0_i32 : i32, i32, i32
  }
  func.func @transform_5(%arg0: i32, %arg1: i32) -> (i32, i32, i32) {
    %c0_i32 = arith.constant 0 : i32
    %c0_i32_0 = arith.constant 0 : i32
    return %arg0, %arg1, %c0_i32 : i32, i32, i32
  }
  func.func @transform_6(%arg0: i32, %arg1: i32) -> (i32, i32) {
    %c0_i32 = arith.constant 0 : i32
    %c0_i32_0 = arith.constant 0 : i32
    %c0_i32_1 = arith.constant 0 : i32
    return %c0_i32, %c0_i32_0 : i32, i32
  }
  func.func @transform_7(%arg0: i32, %arg1: i32) -> (i32, i32) {
    %c0_i32 = arith.constant 0 : i32
    %c0_i32_0 = arith.constant 0 : i32
    %c0_i32_1 = arith.constant 0 : i32
    return %c0_i32, %c0_i32_0 : i32, i32
  }
  func.func @transform_8(%arg0: i32, %arg1: i32) -> (i32, i32) {
    %c0_i32 = arith.constant 0 : i32
    %c0_i32_0 = arith.constant 0 : i32
    %c0_i32_1 = arith.constant 0 : i32
    return %c0_i32, %c0_i32_0 : i32, i32
  }
  func.func @transform_9(%arg0: i32, %arg1: i32) -> i32 {
    %c0_i32 = arith.constant 0 : i32
    %c0_i32_0 = arith.constant 0 : i32
    return %c0_i32 : i32
  }
  func.func @transform_10(%arg0: i32, %arg1: i32) -> i32 {
    %c0_i32 = arith.constant 0 : i32
    %c0_i32_0 = arith.constant 0 : i32
    return %c0_i32 : i32
  }
  func.func @transform_11(%arg0: i32, %arg1: i32) -> (i32, i32, i32) {
    %c0_i32 = arith.constant 0 : i32
    %c0_i32_0 = arith.constant 0 : i32
    %c0_i32_1 = arith.constant 0 : i32
    return %arg0, %c0_i32, %c0_i32_0 : i32, i32, i32
  }
}

</mosaic_0001>

<llo_original>
// kernel: tpu_custom_call.1
$region0: #{tpu_custom_call.1}
  #allocation0 [shape = 'u32[]', space=smem, size = 0x4, offset = 0x4, fixed_abs, tag = 'smem constant byte address 0x4 - core index']
  #allocation1 [shape = 'u32[144,128]{1,0:T(1,128)}', space=vmem, size = 0x12000, scoped, tag = 'internal scratch']
  #allocation2 [shape = 'f32[8]{0:T(128)}', space=smem, size = 0x200, scoped, tag = 'scratch operand']
  %s0 = inlined_call_operand.vmem [shape: f32[4,32,8], index: 0, kind: input, shape index: {}]
  %s1 = inlined_call_operand.vmem [shape: f32[4,32,8], index: 1, kind: input, shape index: {}]
  %s2 = inlined_call_operand.vmem [shape: f32[4,32,8], index: 2, kind: input, shape index: {}]
  %s3 = inlined_call_operand.vmem [shape: f32[4,8,32], index: 3, kind: input, shape index: {}]
  %s4 = inlined_call_operand.vmem [shape: f32[4,32,8], index: 4, kind: input, shape index: {}]
  %s5 = inlined_call_operand.vmem [shape: f32[4,32,8], index: 5, kind: input, shape index: {}]
  %s6 = inlined_call_operand.vmem [shape: f32[4,32], index: 6, kind: input, shape index: {}]
  %s7 = inlined_call_operand.vmem [shape: f32[4,32], index: 7, kind: input, shape index: {}]
  %s8 = inlined_call_operand.vmem [shape: s32[4,1], index: 8, kind: input, shape index: {}]
  %s9 = inlined_call_operand.vmem [shape: s32[4], index: 9, kind: input, shape index: {}]
  %s10 = inlined_call_operand.vmem [shape: s32[4], index: 10, kind: input, shape index: {}]
  %s11 = inlined_call_operand.hbm [shape: f32[2,8,128], index: 11, kind: output, shape index: {}]
  %s12 = sld [smem:[#allocation0]]
  $region97: #{tpu_custom_call.1} parent=0
    _
  %s14 = ssub.s32 1, %s12
  %s15 = scalar_select 0, %s14, %s12
  $region1: #{tpu_custom_call.1} parent=0
    #allocation3 [shape = 'u8[512]{0}', space=smem, size = 0x200, scoped, tag = 'input window, operand 9, single buffered']
    #allocation4 [shape = 's32[2]{0}', space=sflag, size = 0x8, scoped, tag = 'scoped memory for tpu_custom_call.1']
    #allocation5 [shape = 's32[2]{0}', space=sflag, size = 0x8, scoped, tag = 'scoped memory for tpu_custom_call.1']
    #allocation6 [shape = 'u8[512]{0}', space=smem, size = 0x200, scoped, tag = 'input window, operand 10, single buffered']
    #allocation7 [shape = 's32[1]{0}', space=sflag, size = 0x4, scoped, tag = 'scoped memory for tpu_custom_call.1']
    #allocation8 [shape = 'u8[8192]{0}', space=vmem, size = 0x2000, scoped, tag = 'output window, operand 0']
    %16 = vsyncpa [#allocation5], 0
    %17 = vsyncpa [#allocation7], 0
    %18 = vsyncpa [#allocation4], 0
    %s19 = scalar_lea.sflag [#allocation4], 1
    %20 = vsyncpa %s19, 0
    loop: start=0, step=1, limit=4
    $region2: #{tpu_custom_call.1} parent=1 // loop_pre_header
      _
    $region3: #{tpu_custom_call.1} parent=1 // loop_header
      %s22 = sphi 0, %s26
      %p23 = scmp.ge.s32.totalorder %s22, 4
      %s29 = sphi 0, %s41
      %s30 = sphi 0, %s37
      %s31 = sphi 0, %s29
      %s32 = sphi 0, %s30
      %s33 = sphi 0, %s31
      %s34 = sphi 0, %s32
      %s46 = sphi 0, %s48
      %s49 = sphi 0, %s46
      %s50 = sphi 0, %s49
      %s66 = sphi 0, %s50
      %s74 = sphi 0, %s76
      %s77 = sphi 0, %s74
      %s78 = sphi 0, %s77
      %s94 = sphi 0, %s78
      %s102 = sphi 0, %s104
      %s105 = sphi 0, %s102
      %s106 = sphi 0, %s105
      %s122 = sphi 0, %s106
      %s130 = sphi 0, %s132
      %s133 = sphi 0, %s130
      %s134 = sphi 0, %s133
      %s150 = sphi 0, %s134
      %s158 = sphi 0, %s160
      %s161 = sphi 0, %s158
      %s162 = sphi 0, %s161
      %s178 = sphi 0, %s162
      %s186 = sphi 0, %s188
      %s189 = sphi 0, %s186
      %s190 = sphi 0, %s189
      %s206 = sphi 0, %s190
      %s210 = sphi 0, %s210
      %s212 = sphi 0, %s210
      %s213 = sphi 0, %s212
      %s227 = sphi 0, %s213
      %s231 = sphi 0, %s231
      %s233 = sphi 0, %s231
      %s234 = sphi 0, %s233
      %s248 = sphi 0, %s234
      %s252 = sphi 0, %s252
      %s254 = sphi 0, %s252
      %s255 = sphi 0, %s254
      %s269 = sphi 0, %s255
      %s273 = sphi 0, %s273
      %s275 = sphi 0, %s273
      %s276 = sphi 0, %s275
      %s290 = sphi 0, %s276
      %s294 = sphi 0, %s294
      %s296 = sphi 0, %s294
      %s297 = sphi 0, %s296
      %s311 = sphi 0, %s297
      %s317 = sphi 0, %s319
      %s320 = sphi 0, %s317
      %s321 = sphi 0, %s320
      %s337 = sphi 0, %s321
    $region4: #{tpu_custom_call.1} parent=1 // loop_header_branch
      %25 = sbr.rel (%p23) target = $region8
    $region5: #{tpu_custom_call.1} parent=1 // loop_body
      %s27 = ssub.s32 %s22, 1
      %s28 = ssub.s32 %s22, 2
      %s35 = sadd.s32 1, %s30
      %p36 = scmp.ge.s32.totalorder %s35, 1
      %s37 = scalar_select %p36, 0, %s35
      %s38 = sadd.s32 1, %s29
      %s39 = scalar_select %p36, %s38, %s29
      %p40 = scmp.ge.s32.totalorder %s39, 2
      %s41 = scalar_select %p40, 0, %s39
      %s42 = ssub.s32 %s29, %s41
      %s43 = ssub.s32 %s30, %s37
      %s44 = sor.u32 %s42, %s43
      %p45 = scmp.eq.s32.totalorder %s44, 0
      %s47 = sadd.s32 %s46, 1
      %s48 = scalar_select %p45, %s46, %s47
      %p51 = pneg %p45
      %p52 = scmp.eq.s32.totalorder %s22, 1
      %p53 = por %p51, %p52
      %p54 = scmp.ne.s32.totalorder %s46, %s49
      %p55 = scmp.eq.s32.totalorder %s22, 0
      %p56 = por %p54, %p55
      %p57 = scmp.ne.s32.totalorder %s46, %s49
      %p58 = scmp.eq.s32.totalorder %s27, 1
      %p59 = por %p57, %p58
      %p60 = scmp.ne.s32.totalorder %s49, %s50
      %p61 = scmp.eq.s32.totalorder %s27, 0
      %p62 = por %p60, %p61
      %p63 = scmp.ne.s32.totalorder %s49, %s50
      %p64 = scmp.eq.s32.totalorder %s28, 1
      %p65 = por %p63, %p64
      %p67 = scmp.ne.s32.totalorder %s50, %s66
      %p68 = scmp.eq.s32.totalorder %s28, 0
      %p69 = por %p67, %p68
      %s70 = ssub.s32 %s29, %s41
      %s71 = ssub.s32 %s30, %s37
      %s72 = sor.u32 %s70, %s71
      %p73 = scmp.eq.s32.totalorder %s72, 0
      %s75 = sadd.s32 %s74, 1
      %s76 = scalar_select %p73, %s74, %s75
      %p79 = pneg %p73
      %p80 = scmp.eq.s32.totalorder %s22, 1
      %p81 = por %p79, %p80
      %p82 = scmp.ne.s32.totalorder %s74, %s77
      %p83 = scmp.eq.s32.totalorder %s22, 0
      %p84 = por %p82, %p83
      %p85 = scmp.ne.s32.totalorder %s74, %s77
      %p86 = scmp.eq.s32.totalorder %s27, 1
      %p87 = por %p85, %p86
      %p88 = scmp.ne.s32.totalorder %s77, %s78
      %p89 = scmp.eq.s32.totalorder %s27, 0
      %p90 = por %p88, %p89
      %p91 = scmp.ne.s32.totalorder %s77, %s78
      %p92 = scmp.eq.s32.totalorder %s28, 1
      %p93 = por %p91, %p92
      %p95 = scmp.ne.s32.totalorder %s78, %s94
      %p96 = scmp.eq.s32.totalorder %s28, 0
      %p97 = por %p95, %p96
      %s98 = ssub.s32 %s29, %s41
      %s99 = ssub.s32 %s30, %s37
      %s100 = sor.u32 %s98, %s99
      %p101 = scmp.eq.s32.totalorder %s100, 0
      %s103 = sadd.s32 %s102, 1
      %s104 = scalar_select %p101, %s102, %s103
      %p107 = pneg %p101
      %p108 = scmp.eq.s32.totalorder %s22, 1
      %p109 = por %p107, %p108
      %p110 = scmp.ne.s32.totalorder %s102, %s105
      %p111 = scmp.eq.s32.totalorder %s22, 0
      %p112 = por %p110, %p111
      %p113 = scmp.ne.s32.totalorder %s102, %s105
      %p114 = scmp.eq.s32.totalorder %s27, 1
      %p115 = por %p113, %p114
      %p116 = scmp.ne.s32.totalorder %s105, %s106
      %p117 = scmp.eq.s32.totalorder %s27, 0
      %p118 = por %p116, %p117
      %p119 = scmp.ne.s32.totalorder %s105, %s106
      %p120 = scmp.eq.s32.totalorder %s28, 1
      %p121 = por %p119, %p120
      %p123 = scmp.ne.s32.totalorder %s106, %s122
      %p124 = scmp.eq.s32.totalorder %s28, 0
      %p125 = por %p123, %p124
      %s126 = ssub.s32 %s29, %s41
      %s127 = ssub.s32 %s30, %s37
      %s128 = sor.u32 %s126, %s127
      %p129 = scmp.eq.s32.totalorder %s128, 0
      %s131 = sadd.s32 %s130, 1
      %s132 = scalar_select %p129, %s130, %s131
      %p135 = pneg %p129
      %p136 = scmp.eq.s32.totalorder %s22, 1
      %p137 = por %p135, %p136
      %p138 = scmp.ne.s32.totalorder %s130, %s133
      %p139 = scmp.eq.s32.totalorder %s22, 0
      %p140 = por %p138, %p139
      %p141 = scmp.ne.s32.totalorder %s130, %s133
      %p142 = scmp.eq.s32.totalorder %s27, 1
      %p143 = por %p141, %p142
      %p144 = scmp.ne.s32.totalorder %s133, %s134
      %p145 = scmp.eq.s32.totalorder %s27, 0
      %p146 = por %p144, %p145
      %p147 = scmp.ne.s32.totalorder %s133, %s134
      %p148 = scmp.eq.s32.totalorder %s28, 1
      %p149 = por %p147, %p148
      %p151 = scmp.ne.s32.totalorder %s134, %s150
      %p152 = scmp.eq.s32.totalorder %s28, 0
      %p153 = por %p151, %p152
      %s154 = ssub.s32 %s29, %s41
      %s155 = ssub.s32 %s30, %s37
      %s156 = sor.u32 %s154, %s155
      %p157 = scmp.eq.s32.totalorder %s156, 0
      %s159 = sadd.s32 %s158, 1
      %s160 = scalar_select %p157, %s158, %s159
      %p163 = pneg %p157
      %p164 = scmp.eq.s32.totalorder %s22, 1
      %p165 = por %p163, %p164
      %p166 = scmp.ne.s32.totalorder %s158, %s161
      %p167 = scmp.eq.s32.totalorder %s22, 0
      %p168 = por %p166, %p167
      %p169 = scmp.ne.s32.totalorder %s158, %s161
      %p170 = scmp.eq.s32.totalorder %s27, 1
      %p171 = por %p169, %p170
      %p172 = scmp.ne.s32.totalorder %s161, %s162
      %p173 = scmp.eq.s32.totalorder %s27, 0
      %p174 = por %p172, %p173
      %p175 = scmp.ne.s32.totalorder %s161, %s162
      %p176 = scmp.eq.s32.totalorder %s28, 1
      %p177 = por %p175, %p176
      %p179 = scmp.ne.s32.totalorder %s162, %s178
      %p180 = scmp.eq.s32.totalorder %s28, 0
      %p181 = por %p179, %p180
      %s182 = ssub.s32 %s29, %s41
      %s183 = ssub.s32 %s30, %s37
      %s184 = sor.u32 %s182, %s183
      %p185 = scmp.eq.s32.totalorder %s184, 0
      %s187 = sadd.s32 %s186, 1
      %s188 = scalar_select %p185, %s186, %s187
      %p191 = pneg %p185
      %p192 = scmp.eq.s32.totalorder %s22, 1
      %p193 = por %p191, %p192
      %p194 = scmp.ne.s32.totalorder %s186, %s189
      %p195 = scmp.eq.s32.totalorder %s22, 0
      %p196 = por %p194, %p195
      %p197 = scmp.ne.s32.totalorder %s186, %s189
      %p198 = scmp.eq.s32.totalorder %s27, 1
      %p199 = por %p197, %p198
      %p200 = scmp.ne.s32.totalorder %s189, %s190
      %p201 = scmp.eq.s32.totalorder %s27, 0
      %p202 = por %p200, %p201
      %p203 = scmp.ne.s32.totalorder %s189, %s190
      %p204 = scmp.eq.s32.totalorder %s28, 1
      %p205 = por %p203, %p204
      %p207 = scmp.ne.s32.totalorder %s190, %s206
      %p208 = scmp.eq.s32.totalorder %s28, 0
      %p209 = por %p207, %p208
      %s211 = sadd.s32 %s210, 1
      %p214 = scmp.eq.s32.totalorder %s22, 1
      %p215 = scmp.ne.s32.totalorder %s210, %s212
      %p216 = scmp.eq.s32.totalorder %s22, 0
      %p217 = por %p215, %p216
      %p218 = scmp.ne.s32.totalorder %s210, %s212
      %p219 = scmp.eq.s32.totalorder %s27, 1
      %p220 = por %p218, %p219
      %p221 = scmp.ne.s32.totalorder %s212, %s213
      %p222 = scmp.eq.s32.totalorder %s27, 0
      %p223 = por %p221, %p222
      %p224 = scmp.ne.s32.totalorder %s212, %s213
      %p225 = scmp.eq.s32.totalorder %s28, 1
      %p226 = por %p224, %p225
      %p228 = scmp.ne.s32.totalorder %s213, %s227
      %p229 = scmp.eq.s32.totalorder %s28, 0
      %p230 = por %p228, %p229
      %s232 = sadd.s32 %s231, 1
      %p235 = scmp.eq.s32.totalorder %s22, 1
      %p236 = scmp.ne.s32.totalorder %s231, %s233
      %p237 = scmp.eq.s32.totalorder %s22, 0
      %p238 = por %p236, %p237
      %p239 = scmp.ne.s32.totalorder %s231, %s233
      %p240 = scmp.eq.s32.totalorder %s27, 1
      %p241 = por %p239, %p240
      %p242 = scmp.ne.s32.totalorder %s233, %s234
      %p243 = scmp.eq.s32.totalorder %s27, 0
      %p244 = por %p242, %p243
      %p245 = scmp.ne.s32.totalorder %s233, %s234
      %p246 = scmp.eq.s32.totalorder %s28, 1
      %p247 = por %p245, %p246
      %p249 = scmp.ne.s32.totalorder %s234, %s248
      %p250 = scmp.eq.s32.totalorder %s28, 0
      %p251 = por %p249, %p250
      %s253 = sadd.s32 %s252, 1
      %p256 = scmp.eq.s32.totalorder %s22, 1
      %p257 = scmp.ne.s32.totalorder %s252, %s254
      %p258 = scmp.eq.s32.totalorder %s22, 0
      %p259 = por %p257, %p258
      %p260 = scmp.ne.s32.totalorder %s252, %s254
      %p261 = scmp.eq.s32.totalorder %s27, 1
      %p262 = por %p260, %p261
      %p263 = scmp.ne.s32.totalorder %s254, %s255
      %p264 = scmp.eq.s32.totalorder %s27, 0
      %p265 = por %p263, %p264
      %p266 = scmp.ne.s32.totalorder %s254, %s255
      %p267 = scmp.eq.s32.totalorder %s28, 1
      %p268 = por %p266, %p267
      %p270 = scmp.ne.s32.totalorder %s255, %s269
      %p271 = scmp.eq.s32.totalorder %s28, 0
      %p272 = por %p270, %p271
      %s274 = sadd.s32 %s273, 1
      %p277 = scmp.eq.s32.totalorder %s22, 1
      %p278 = scmp.ne.s32.totalorder %s273, %s275
      %p279 = scmp.eq.s32.totalorder %s22, 0
      %p280 = por %p278, %p279
      %p281 = scmp.ne.s32.totalorder %s273, %s275
      %p282 = scmp.eq.s32.totalorder %s27, 1
      %p283 = por %p281, %p282
      %p284 = scmp.ne.s32.totalorder %s275, %s276
      %p285 = scmp.eq.s32.totalorder %s27, 0
      %p286 = por %p284, %p285
      %p287 = scmp.ne.s32.totalorder %s275, %s276
      %p288 = scmp.eq.s32.totalorder %s28, 1
      %p289 = por %p287, %p288
      %p291 = scmp.ne.s32.totalorder %s276, %s290
      %p292 = scmp.eq.s32.totalorder %s28, 0
      %p293 = por %p291, %p292
      %s295 = sadd.s32 %s294, 1
      %p298 = scmp.eq.s32.totalorder %s22, 1
      %p299 = scmp.ne.s32.totalorder %s294, %s296
      %p300 = scmp.eq.s32.totalorder %s22, 0
      %p301 = por %p299, %p300
      %p302 = scmp.ne.s32.totalorder %s294, %s296
      %p303 = scmp.eq.s32.totalorder %s27, 1
      %p304 = por %p302, %p303
      %p305 = scmp.ne.s32.totalorder %s296, %s297
      %p306 = scmp.eq.s32.totalorder %s27, 0
      %p307 = por %p305, %p306
      %p308 = scmp.ne.s32.totalorder %s296, %s297
      %p309 = scmp.eq.s32.totalorder %s28, 1
      %p310 = por %p308, %p309
      %p312 = scmp.ne.s32.totalorder %s297, %s311
      %p313 = scmp.eq.s32.totalorder %s28, 0
      %p314 = por %p312, %p313
      %s315 = ssub.s32 %s29, %s41
      %p316 = scmp.eq.s32.totalorder %s315, 0
      %s318 = sadd.s32 %s317, 1
      %s319 = scalar_select %p316, %s317, %s318
      %p322 = pneg %p316
      %p323 = scmp.eq.s32.totalorder %s22, 1
      %p324 = por %p322, %p323
      %p325 = scmp.ne.s32.totalorder %s317, %s320
      %p326 = scmp.eq.s32.totalorder %s22, 0
      %p327 = por %p325, %p326
      %p328 = scmp.ne.s32.totalorder %s317, %s320
      %p329 = scmp.eq.s32.totalorder %s27, 1
      %p330 = por %p328, %p329
      %p331 = scmp.ne.s32.totalorder %s320, %s321
      %p332 = scmp.eq.s32.totalorder %s27, 0
      %p333 = por %p331, %p332
      %p334 = scmp.ne.s32.totalorder %s320, %s321
      %p335 = scmp.eq.s32.totalorder %s28, 1
      %p336 = por %p334, %p335
      %p338 = scmp.ne.s32.totalorder %s321, %s337
      %p339 = scmp.eq.s32.totalorder %s28, 0
      %p340 = por %p338, %p339
      %p341 = scmp.le.s32.totalorder 1, %s22
      %p342 = scmp.lt.s32.totalorder %s22, 3
      %p343 = pnand %p341, %p342
      %p344 = pneg %p343
      // Predicated region
      $region9: #{tpu_custom_call.1} parent=5 // pred_check
        _
      $region10: #{tpu_custom_call.1} parent=5 // pred_check_branch
        %346 = sbr.rel (%p343) target = $region12
      $region11: #{tpu_custom_call.1} parent=5 // pred_region
        %s347 = ssub.s32 %s22, 1
        // Predicated region
        $region13: #{tpu_custom_call.1} parent=11 // pred_check
          %p348 = pneg %p223
        $region14: #{tpu_custom_call.1} parent=11 // pred_check_branch
          %350 = sbr.rel (%p348) target = $region16
        $region15: #{tpu_custom_call.1} parent=11 // pred_region
          _
        $region16: #{tpu_custom_call.1} parent=11 // pred_fallthru
          _
        // Predicated region
        $region17: #{tpu_custom_call.1} parent=11 // pred_check
          %p351 = pneg %p244
        $region18: #{tpu_custom_call.1} parent=11 // pred_check_branch
          %353 = sbr.rel (%p351) target = $region20
        $region19: #{tpu_custom_call.1} parent=11 // pred_region
          _
        $region20: #{tpu_custom_call.1} parent=11 // pred_fallthru
          _
        // Predicated region
        $region21: #{tpu_custom_call.1} parent=11 // pred_check
          %p354 = pneg %p265
        $region22: #{tpu_custom_call.1} parent=11 // pred_check_branch
          %356 = sbr.rel (%p354) target = $region24
        $region23: #{tpu_custom_call.1} parent=11 // pred_region
          _
        $region24: #{tpu_custom_call.1} parent=11 // pred_fallthru
          _
        // Predicated region
        $region25: #{tpu_custom_call.1} parent=11 // pred_check
          %p357 = pneg %p286
        $region26: #{tpu_custom_call.1} parent=11 // pred_check_branch
          %359 = sbr.rel (%p357) target = $region28
        $region27: #{tpu_custom_call.1} parent=11 // pred_region
          %s361 = ssub.s32 16, 16
          %362 = vsyncadd [#allocation5], %s361
          %s364 = sshll.u32 %s9, 4
          %s365 = int_to_ptr.vmem [resolvable:$true] %s364
          %367 = dma.vmem_to_smem %s365, 16, [#allocation3], [#allocation5]
        $region28: #{tpu_custom_call.1} parent=11 // pred_fallthru
          _
        // Predicated region
        $region29: #{tpu_custom_call.1} parent=11 // pred_check
          %p368 = pneg %p307
        $region30: #{tpu_custom_call.1} parent=11 // pred_check_branch
          %370 = sbr.rel (%p368) target = $region32
        $region31: #{tpu_custom_call.1} parent=11 // pred_region
          %s372 = ssub.s32 16, 16
          %373 = vsyncadd [#allocation7], %s372
          %s375 = sshll.u32 %s10, 4
          %s376 = int_to_ptr.vmem [resolvable:$true] %s375
          %378 = dma.vmem_to_smem %s376, 16, [#allocation6], [#allocation7]
        $region32: #{tpu_custom_call.1} parent=11 // pred_fallthru
          _
      $region12: #{tpu_custom_call.1} parent=5 // pred_fallthru
        _
      %p379 = scmp.lt.s32.totalorder %s22, 2
      // Predicated region
      $region33: #{tpu_custom_call.1} parent=5 // pred_check
        %p380 = pneg %p379
      $region34: #{tpu_custom_call.1} parent=5 // pred_check_branch
        %382 = sbr.rel (%p380) target = $region36
      $region35: #{tpu_custom_call.1} parent=5 // pred_region
        // Predicated region
        $region37: #{tpu_custom_call.1} parent=35 // pred_check
          %p383 = pneg %p56
        $region38: #{tpu_custom_call.1} parent=35 // pred_check_branch
          %385 = sbr.rel (%p383) target = $region40
        $region39: #{tpu_custom_call.1} parent=35 // pred_region
          %s386 = smul.u32 2, %s29
          %s387 = smul.u32 4, %s30
          %p388 = scmp.lt.s32.totalorder %s386, 3
          %s389 = scalar_select %p388, %s386, 3
          %p390 = scmp.lt.s32.totalorder %s387, 3
          %s391 = scalar_select %p390, %s387, 3
          %s392 = smul.addr %s389, 4
          %s393 = sadd.s32 %s391, %s392
          %s394 = smul.addr %s393, 8
          %s395 = scalar_lea.vmem %s0, %s394
          %s396 = smul.u32 2, %s29
          %s397 = smul.u32 4, %s30
        $region40: #{tpu_custom_call.1} parent=35 // pred_fallthru
          _
        // Predicated region
        $region41: #{tpu_custom_call.1} parent=35 // pred_check
          %p398 = pneg %p84
        $region42: #{tpu_custom_call.1} parent=35 // pred_check_branch
          %400 = sbr.rel (%p398) target = $region44
        $region43: #{tpu_custom_call.1} parent=35 // pred_region
          %s401 = smul.u32 2, %s29
          %s402 = smul.u32 4, %s30
          %p403 = scmp.lt.s32.totalorder %s401, 3
          %s404 = scalar_select %p403, %s401, 3
          %p405 = scmp.lt.s32.totalorder %s402, 3
          %s406 = scalar_select %p405, %s402, 3
          %s407 = smul.addr %s404, 4
          %s408 = sadd.s32 %s406, %s407
          %s409 = smul.addr %s408, 8
          %s410 = scalar_lea.vmem %s1, %s409
          %s411 = smul.u32 2, %s29
          %s412 = smul.u32 4, %s30
        $region44: #{tpu_custom_call.1} parent=35 // pred_fallthru
          _
        // Predicated region
        $region45: #{tpu_custom_call.1} parent=35 // pred_check
          %p413 = pneg %p112
        $region46: #{tpu_custom_call.1} parent=35 // pred_check_branch
          %415 = sbr.rel (%p413) target = $region48
        $region47: #{tpu_custom_call.1} parent=35 // pred_region
          %s416 = smul.u32 2, %s29
          %s417 = smul.u32 4, %s30
          %p418 = scmp.lt.s32.totalorder %s416, 3
          %s419 = scalar_select %p418, %s416, 3
          %p420 = scmp.lt.s32.totalorder %s417, 3
          %s421 = scalar_select %p420, %s417, 3
          %s422 = smul.addr %s419, 4
          %s423 = sadd.s32 %s421, %s422
          %s424 = smul.addr %s423, 8
          %s425 = scalar_lea.vmem %s2, %s424
          %s426 = smul.u32 2, %s29
          %s427 = smul.u32 4, %s30
        $region48: #{tpu_custom_call.1} parent=35 // pred_fallthru
          _
        // Predicated region
        $region49: #{tpu_custom_call.1} parent=35 // pred_check
          %p428 = pneg %p140
        $region50: #{tpu_custom_call.1} parent=35 // pred_check_branch
          %430 = sbr.rel (%p428) target = $region52
        $region51: #{tpu_custom_call.1} parent=35 // pred_region
          %s431 = smul.u32 2, %s29
          %p432 = scmp.lt.s32.totalorder %s431, 3
          %s433 = scalar_select %p432, %s431, 3
          %p434 = scmp.lt.s32.totalorder %s30, 0
          %s435 = scalar_select %p434, %s30, 0
          %s436 = sadd.s32 %s435, %s433
          %s437 = smul.addr %s436, 8
          %s438 = scalar_lea.vmem %s3, %s437
          %s439 = smul.u32 2, %s29
        $region52: #{tpu_custom_call.1} parent=35 // pred_fallthru
          _
        // Predicated region
        $region53: #{tpu_custom_call.1} parent=35 // pred_check
          %p440 = pneg %p168
        $region54: #{tpu_custom_call.1} parent=35 // pred_check_branch
          %442 = sbr.rel (%p440) target = $region56
        $region55: #{tpu_custom_call.1} parent=35 // pred_region
          %s443 = smul.u32 2, %s29
          %s444 = smul.u32 4, %s30
          %p445 = scmp.lt.s32.totalorder %s443, 3
          %s446 = scalar_select %p445, %s443, 3
          %p447 = scmp.lt.s32.totalorder %s444, 3
          %s448 = scalar_select %p447, %s444, 3
          %s449 = smul.addr %s446, 4
          %s450 = sadd.s32 %s448, %s449
          %s451 = smul.addr %s450, 8
          %s452 = scalar_lea.vmem %s4, %s451
          %s453 = smul.u32 2, %s29
          %s454 = smul.u32 4, %s30
        $region56: #{tpu_custom_call.1} parent=35 // pred_fallthru
          _
        // Predicated region
        $region57: #{tpu_custom_call.1} parent=35 // pred_check
          %p455 = pneg %p196
        $region58: #{tpu_custom_call.1} parent=35 // pred_check_branch
          %457 = sbr.rel (%p455) target = $region60
        $region59: #{tpu_custom_call.1} parent=35 // pred_region
          %s458 = smul.u32 2, %s29
          %s459 = smul.u32 4, %s30
          %p460 = scmp.lt.s32.totalorder %s458, 3
          %s461 = scalar_select %p460, %s458, 3
          %p462 = scmp.lt.s32.totalorder %s459, 3
          %s463 = scalar_select %p462, %s459, 3
          %s464 = smul.addr %s461, 4
          %s465 = sadd.s32 %s463, %s464
          %s466 = smul.addr %s465, 8
          %s467 = scalar_lea.vmem %s5, %s466
          %s468 = smul.u32 2, %s29
          %s469 = smul.u32 4, %s30
        $region60: #{tpu_custom_call.1} parent=35 // pred_fallthru
          _
      $region36: #{tpu_custom_call.1} parent=5 // pred_fallthru
        _
      %p470 = scmp.le.s32.totalorder 1, %s22
      %p471 = scmp.lt.s32.totalorder %s22, 3
      %p472 = pnand %p470, %p471
      %p473 = pneg %p472
      // Predicated region
      $region61: #{tpu_custom_call.1} parent=5 // pred_check
        _
      $region62: #{tpu_custom_call.1} parent=5 // pred_check_branch
        %475 = sbr.rel (%p472) target = $region64
      $region63: #{tpu_custom_call.1} parent=5 // pred_region
        %s476 = ssub.s32 %s22, 1
        // Predicated region
        $region65: #{tpu_custom_call.1} parent=63 // pred_check
          %p477 = pneg %p286
        $region66: #{tpu_custom_call.1} parent=63 // pred_check_branch
          %479 = sbr.rel (%p477) target = $region68
        $region67: #{tpu_custom_call.1} parent=63 // pred_region
          %480 = dma.done [#allocation5], 16
        $region68: #{tpu_custom_call.1} parent=63 // pred_fallthru
          _
        // Predicated region
        $region69: #{tpu_custom_call.1} parent=63 // pred_check
          %p481 = pneg %p307
        $region70: #{tpu_custom_call.1} parent=63 // pred_check_branch
          %483 = sbr.rel (%p481) target = $region72
        $region71: #{tpu_custom_call.1} parent=63 // pred_region
          %484 = dma.done [#allocation7], 16
        $region72: #{tpu_custom_call.1} parent=63 // pred_fallthru
          _
        %485 = sfence
        %s486 = smul.u32 2, %s31
        %s487 = smul.u32 4, %s32
        %p488 = scmp.lt.s32.totalorder %s486, 3
        %s489 = scalar_select %p488, %s486, 3
        %p490 = scmp.lt.s32.totalorder %s487, 3
        %s491 = scalar_select %p490, %s487, 3
        %s492 = smul.addr %s489, 4
        %s493 = sadd.s32 %s491, %s492
        %s494 = smul.addr %s493, 8
        %s495 = scalar_lea.vmem %s0, %s494
        %p496 = pneg %p62
        %p497 = pneg %p59
        %s498 = smul.u32 2, %s31
        %s499 = smul.u32 4, %s32
        %p500 = scmp.lt.s32.totalorder %s498, 3
        %s501 = scalar_select %p500, %s498, 3
        %p502 = scmp.lt.s32.totalorder %s499, 3
        %s503 = scalar_select %p502, %s499, 3
        %s504 = smul.addr %s501, 4
        %s505 = sadd.s32 %s503, %s504
        %s506 = smul.addr %s505, 8
        %s507 = scalar_lea.vmem %s1, %s506
        %p508 = pneg %p90
        %p509 = pneg %p87
        %s510 = smul.u32 2, %s31
        %s511 = smul.u32 4, %s32
        %p512 = scmp.lt.s32.totalorder %s510, 3
        %s513 = scalar_select %p512, %s510, 3
        %p514 = scmp.lt.s32.totalorder %s511, 3
        %s515 = scalar_select %p514, %s511, 3
        %s516 = smul.addr %s513, 4
        %s517 = sadd.s32 %s515, %s516
        %s518 = smul.addr %s517, 8
        %s519 = scalar_lea.vmem %s2, %s518
        %p520 = pneg %p118
        %p521 = pneg %p115
        %s522 = smul.u32 2, %s31
        %p523 = scmp.lt.s32.totalorder %s522, 3
        %s524 = scalar_select %p523, %s522, 3
        %p525 = scmp.lt.s32.totalorder %s32, 0
        %s526 = scalar_select %p525, %s32, 0
        %s527 = sadd.s32 %s526, %s524
        %s528 = smul.addr %s527, 8
        %s529 = scalar_lea.vmem %s3, %s528
        %p530 = pneg %p146
        %p531 = pneg %p143
        %s532 = smul.u32 2, %s31
        %s533 = smul.u32 4, %s32
        %p534 = scmp.lt.s32.totalorder %s532, 3
        %s535 = scalar_select %p534, %s532, 3
        %p536 = scmp.lt.s32.totalorder %s533, 3
        %s537 = scalar_select %p536, %s533, 3
        %s538 = smul.addr %s535, 4
        %s539 = sadd.s32 %s537, %s538
        %s540 = smul.addr %s539, 8
        %s541 = scalar_lea.vmem %s4, %s540
        %p542 = pneg %p174
        %p543 = pneg %p171
        %s544 = smul.u32 2, %s31
        %s545 = smul.u32 4, %s32
        %p546 = scmp.lt.s32.totalorder %s544, 3
        %s547 = scalar_select %p546, %s544, 3
        %p548 = scmp.lt.s32.totalorder %s545, 3
        %s549 = scalar_select %p548, %s545, 3
        %s550 = smul.addr %s547, 4
        %s551 = sadd.s32 %s549, %s550
        %s552 = smul.addr %s551, 8
        %s553 = scalar_lea.vmem %s5, %s552
        %p554 = pneg %p202
        %p555 = pneg %p199
        %p556 = pneg %p223
        %p557 = pneg %p220
        %p558 = pneg %p244
        %p559 = pneg %p241
        %p560 = pneg %p265
        %p561 = pneg %p262
        %p562 = pneg %p286
        %p563 = pneg %p283
        %p564 = pneg %p307
        %p565 = pneg %p304
        %p566 = pneg %p333
        %p567 = pneg %p330
        %s568 = sand.u32 %s320, 1
        %s569 = scalar_lea.sflag [#allocation4], %s568
        %s570 = sand.u32 %s320, 1
        %s571 = smul.addr %s570, 8
        %s572 = scalar_lea.vmem [#allocation8], %s571
        %s573 = smul.u32 2, %s31
        %s574 = smul.u32 4, %s32
        %p575 = scmp.lt.s32.totalorder %s573, 3
        %s576 = scalar_select %p575, %s573, 3
        %p577 = scmp.lt.s32.totalorder %s574, 3
        %s578 = scalar_select %p577, %s574, 3
        %s579 = smul.addr %s576, 4
        %s580 = sadd.s32 %s578, %s579
        %s581 = smul.addr %s580, 8
        %s582 = scalar_lea.vmem %s0, %s581
        %s583 = smul.u32 2, %s31
        %s584 = smul.u32 4, %s32
        %s585 = smul.u32 2, %s31
        %s586 = smul.u32 4, %s32
        %p587 = scmp.lt.s32.totalorder %s585, 3
        %s588 = scalar_select %p587, %s585, 3
        %p589 = scmp.lt.s32.totalorder %s586, 3
        %s590 = scalar_select %p589, %s586, 3
        %s591 = smul.addr %s588, 4
        %s592 = sadd.s32 %s590, %s591
        %s593 = smul.addr %s592, 8
        %s594 = scalar_lea.vmem %s1, %s593
        %s595 = smul.u32 2, %s31
        %s596 = smul.u32 4, %s32
        %s597 = smul.u32 2, %s31
        %s598 = smul.u32 4, %s32
        %p599 = scmp.lt.s32.totalorder %s597, 3
        %s600 = scalar_select %p599, %s597, 3
        %p601 = scmp.lt.s32.totalorder %s598, 3
        %s602 = scalar_select %p601, %s598, 3
        %s603 = smul.addr %s600, 4
        %s604 = sadd.s32 %s602, %s603
        %s605 = smul.addr %s604, 8
        %s606 = scalar_lea.vmem %s2, %s605
        %s607 = smul.u32 2, %s31
        %s608 = smul.u32 4, %s32
        %s609 = smul.u32 2, %s31
        %p610 = scmp.lt.s32.totalorder %s609, 3
        %s611 = scalar_select %p610, %s609, 3
        %p612 = scmp.lt.s32.totalorder %s32, 0
        %s613 = scalar_select %p612, %s32, 0
        %s614 = sadd.s32 %s613, %s611
        %s615 = smul.addr %s614, 8
        %s616 = scalar_lea.vmem %s3, %s615
        %s617 = smul.u32 2, %s31
        %s618 = smul.u32 2, %s31
        %s619 = smul.u32 4, %s32
        %p620 = scmp.lt.s32.totalorder %s618, 3
        %s621 = scalar_select %p620, %s618, 3
        %p622 = scmp.lt.s32.totalorder %s619, 3
        %s623 = scalar_select %p622, %s619, 3
        %s624 = smul.addr %s621, 4
        %s625 = sadd.s32 %s623, %s624
        %s626 = smul.addr %s625, 8
        %s627 = scalar_lea.vmem %s4, %s626
        %s628 = smul.u32 2, %s31
        %s629 = smul.u32 4, %s32
        %s630 = smul.u32 2, %s31
        %s631 = smul.u32 4, %s32
        %p632 = scmp.lt.s32.totalorder %s630, 3
        %s633 = scalar_select %p632, %s630, 3
        %p634 = scmp.lt.s32.totalorder %s631, 3
        %s635 = scalar_select %p634, %s631, 3
        %s636 = smul.addr %s633, 4
        %s637 = sadd.s32 %s635, %s636
        %s638 = smul.addr %s637, 8
        %s639 = scalar_lea.vmem %s5, %s638
        %s640 = smul.u32 2, %s31
        %s641 = smul.u32 4, %s32
        %s642 = smul.u32 %s31, 2
        %s643 = smul.u32 %s32, 32
        %s644 = sld [smem:[#allocation3 + %s642]]
        %v645 = vstv %s644
        %s646 = sadd.s32 %s642, 1
        %s647 = sld [smem:[#allocation3 + %s646]]
        %v648 = vstv %s647
        %s649 = sld [smem:[#allocation6 + %s642]]
        %v650 = vstv %s649
        %s651 = sld [smem:[#allocation6 + %s646]]
        %v652 = vstv %s651
        %p653 = scmp.eq.s32.totalorder %s32, 0
        // Predicated region
        $region73: #{tpu_custom_call.1} parent=63 // pred_check
          %p654 = pneg %p653
        $region74: #{tpu_custom_call.1} parent=63 // pred_check_branch
          %656 = sbr.rel (%p654) target = $region76
        $region75: #{tpu_custom_call.1} parent=63 // pred_region
          %s657 = scalar_lea.smem [#allocation2], 0
          %658 = sst [smem:[%s657]] 0.0
          %s659 = scalar_lea.smem [#allocation2], 1
          %660 = sst [smem:[%s659]] 0.0
          %s661 = scalar_lea.smem [#allocation2], 2
          %662 = sst [smem:[%s661]] 0.0
          %s663 = scalar_lea.smem [#allocation2], 3
          %664 = sst [smem:[%s663]] 0.0
          %s665 = scalar_lea.smem [#allocation2], 4
          %666 = sst [smem:[%s665]] 0.0
          %s667 = scalar_lea.smem [#allocation2], 5
          %668 = sst [smem:[%s667]] 0.0
          %s669 = scalar_lea.smem [#allocation2], 6
          %670 = sst [smem:[%s669]] 0.0
          %s671 = scalar_lea.smem [#allocation2], 7
          %672 = sst [smem:[%s671]] 0.0
        $region76: #{tpu_custom_call.1} parent=63 // pred_fallthru
          _
        %v673 = vld [vmem:[%s606] sm:$0xff]
        %v674 = vld [vmem:[%s606 + $0x8] sm:$0xff]
        %v675 = vld [vmem:[%s606 + $0x10] sm:$0xff]
        %v676 = vld [vmem:[%s606 + $0x18] sm:$0xff]
        %v677 = vld [vmem:[%s606 + $0x20] sm:$0xff]
        %v678 = vld [vmem:[%s606 + $0x28] sm:$0xff]
        %v679 = vld [vmem:[%s606 + $0x30] sm:$0xff]
        %v680 = vld [vmem:[%s606 + $0x38] sm:$0xff]
        %v681 = vlaneseq
        %v682 = vshrl.u32 %v681, 7
        %v683 = vadd.s32 %v682, 8
        %v684 = vadd.s32 %v682, 16
        %v685 = vadd.s32 %v682, 24
        %v686 = vstv %s643
        %v687 = vadd.s32 %v686, %v682
        %v688 = vadd.s32 %v686, %v683
        %v689 = vadd.s32 %v686, %v684
        %v690 = vadd.s32 %v686, %v685
        %vm691 = vcmp.lt.s32.totalorder %v687, %v645
        %vm692 = vcmp.lt.s32.totalorder %v688, %v645
        %vm693 = vcmp.lt.s32.totalorder %v689, %v645
        %vm694 = vcmp.lt.s32.totalorder %v690, %v645
        %vm695 = vcmp.lt.s32.totalorder %v687, %v648
        %vm696 = vcmp.lt.s32.totalorder %v688, %v648
        %vm697 = vcmp.lt.s32.totalorder %v689, %v648
        %vm698 = vcmp.lt.s32.totalorder %v690, %v648
        %v699 = vld [vmem:[%s582] sm:$0xff]
        %v700 = vld [vmem:[%s582 + $0x8] sm:$0xff]
        %v701 = vld [vmem:[%s582 + $0x10] sm:$0xff]
        %v702 = vld [vmem:[%s582 + $0x18] sm:$0xff]
        %v703 = vld [vmem:[%s582 + $0x20] sm:$0xff]
        %v704 = vld [vmem:[%s582 + $0x28] sm:$0xff]
        %v705 = vld [vmem:[%s582 + $0x30] sm:$0xff]
        %v706 = vld [vmem:[%s582 + $0x38] sm:$0xff]
        %v707 = vsub.f32 %v699, %v673
        %v708 = vsub.f32 %v700, %v674
        %v709 = vsub.f32 %v701, %v675
        %v710 = vsub.f32 %v702, %v676
        %v711 = vsub.f32 %v703, %v677
        %v712 = vsub.f32 %v704, %v678
        %v713 = vsub.f32 %v705, %v679
        %v714 = vsub.f32 %v706, %v680
        %v715 = vmul.f32 %v707, %v707
        %v716 = vmul.f32 %v708, %v708
        %v717 = vmul.f32 %v709, %v709
        %v718 = vmul.f32 %v710, %v710
        %v719 = vmul.f32 %v711, %v711
        %v720 = vmul.f32 %v712, %v712
        %v721 = vmul.f32 %v713, %v713
        %v722 = vmul.f32 %v714, %v714
        %vm723 = vcmask 64512
        %v724 = vsel %vm723, %v715, 0.0
        %725 = vadd.xlane.f32.xlu0 %v724
        %v726 = vpop.xlane.xlu0 %725
        %v727 = vsel %vm723, %v716, 0.0
        %728 = vadd.xlane.f32.xlu0 %v727
        %v729 = vpop.xlane.xlu0 %728
        %v730 = vsel %vm723, %v717, 0.0
        %731 = vadd.xlane.f32.xlu0 %v730
        %v732 = vpop.xlane.xlu0 %731
        %v733 = vsel %vm723, %v718, 0.0
        %734 = vadd.xlane.f32.xlu0 %v733
        %v735 = vpop.xlane.xlu0 %734
        %v736 = vsel %vm723, %v719, 0.0
        %737 = vadd.xlane.f32.xlu0 %v736
        %v738 = vpop.xlane.xlu0 %737
        %v739 = vsel %vm723, %v720, 0.0
        %740 = vadd.xlane.f32.xlu0 %v739
        %v741 = vpop.xlane.xlu0 %740
        %v742 = vsel %vm723, %v721, 0.0
        %743 = vadd.xlane.f32.xlu0 %v742
        %v744 = vpop.xlane.xlu0 %743
        %v745 = vsel %vm723, %v722, 0.0
        %746 = vadd.xlane.f32.xlu0 %v745
        %v747 = vpop.xlane.xlu0 %746
        %v748 = vsel %vm691, %v726, 0.0
        %v749 = vsel %vm692, %v729, 0.0
        %v750 = vsel %vm693, %v732, 0.0
        %v751 = vsel %vm694, %v735, 0.0
        %v752 = vsel %vm695, %v738, 0.0
        %v753 = vsel %vm696, %v741, 0.0
        %v754 = vsel %vm697, %v744, 0.0
        %v755 = vsel %vm698, %v747, 0.0
        %vm756 = vcmask 7168
        %v757 = vsel %vm756, %v748, 0.0
        %v758 = vsel %vm756, %v749, 0.0
        %v759 = vadd.f32 %v757, %v758
        %v760 = vsel %vm756, %v750, 0.0
        %v761 = vadd.f32 %v759, %v760
        %v762 = vsel %vm756, %v751, 0.0
        %v763 = vadd.f32 %v761, %v762
        %v764 = vsel %vm756, %v752, 0.0
        %v765 = vadd.f32 %v763, %v764
        %v766 = vsel %vm756, %v753, 0.0
        %v767 = vadd.f32 %v765, %v766
        %v768 = vsel %vm756, %v754, 0.0
        %v769 = vadd.f32 %v767, %v768
        %v770 = vsel %vm756, %v755, 0.0
        %v771 = vadd.f32 %v769, %v770
        %772 = vadd.xlane.f32.xlu0 %v771
        %v773 = vpop.xlane.xlu0 %772
        %v774 = vrot.slane %v773, 4
        %v775 = vadd.f32 %v773, %v774
        %v776 = vrot.slane %v775, 2
        %v777 = vadd.f32 %v775, %v776
        %v778 = vrot.slane %v777, 1
        %v779 = vadd.f32 %v777, %v778
        %s780 = vtos %v779
        %v781 = vld [vmem:[%s594] sm:$0xff]
        %v782 = vld [vmem:[%s594 + $0x8] sm:$0xff]
        %v783 = vld [vmem:[%s594 + $0x10] sm:$0xff]
        %v784 = vld [vmem:[%s594 + $0x18] sm:$0xff]
        %v785 = vld [vmem:[%s594 + $0x20] sm:$0xff]
        %v786 = vld [vmem:[%s594 + $0x28] sm:$0xff]
        %v787 = vld [vmem:[%s594 + $0x30] sm:$0xff]
        %v788 = vld [vmem:[%s594 + $0x38] sm:$0xff]
        %v789 = vsub.f32 %v781, %v673
        %v790 = vsub.f32 %v782, %v674
        %v791 = vsub.f32 %v783, %v675
        %v792 = vsub.f32 %v784, %v676
        %v793 = vsub.f32 %v785, %v677
        %v794 = vsub.f32 %v786, %v678
        %v795 = vsub.f32 %v787, %v679
        %v796 = vsub.f32 %v788, %v680
        %v797 = vmul.f32 %v789, %v789
        %v798 = vmul.f32 %v790, %v790
        %v799 = vmul.f32 %v791, %v791
        %v800 = vmul.f32 %v792, %v792
        %v801 = vmul.f32 %v793, %v793
        %v802 = vmul.f32 %v794, %v794
        %v803 = vmul.f32 %v795, %v795
        %v804 = vmul.f32 %v796, %v796
        %v805 = vsel %vm723, %v797, 0.0
        %806 = vadd.xlane.f32.xlu0 %v805
        %v807 = vpop.xlane.xlu0 %806
        %v808 = vsel %vm723, %v798, 0.0
        %809 = vadd.xlane.f32.xlu0 %v808
        %v810 = vpop.xlane.xlu0 %809
        %v811 = vsel %vm723, %v799, 0.0
        %812 = vadd.xlane.f32.xlu0 %v811
        %v813 = vpop.xlane.xlu0 %812
        %v814 = vsel %vm723, %v800, 0.0
        %815 = vadd.xlane.f32.xlu0 %v814
        %v816 = vpop.xlane.xlu0 %815
        %v817 = vsel %vm723, %v801, 0.0
        %818 = vadd.xlane.f32.xlu0 %v817
        %v819 = vpop.xlane.xlu0 %818
        %v820 = vsel %vm723, %v802, 0.0
        %821 = vadd.xlane.f32.xlu0 %v820
        %v822 = vpop.xlane.xlu0 %821
        %v823 = vsel %vm723, %v803, 0.0
        %824 = vadd.xlane.f32.xlu0 %v823
        %v825 = vpop.xlane.xlu0 %824
        %v826 = vsel %vm723, %v804, 0.0
        %827 = vadd.xlane.f32.xlu0 %v826
        %v828 = vpop.xlane.xlu0 %827
        %v829 = vsel %vm691, %v807, 0.0
        %v830 = vsel %vm692, %v810, 0.0
        %v831 = vsel %vm693, %v813, 0.0
        %v832 = vsel %vm694, %v816, 0.0
        %v833 = vsel %vm695, %v819, 0.0
        %v834 = vsel %vm696, %v822, 0.0
        %v835 = vsel %vm697, %v825, 0.0
        %v836 = vsel %vm698, %v828, 0.0
        %v837 = vsel %vm756, %v829, 0.0
        %v838 = vsel %vm756, %v830, 0.0
        %v839 = vadd.f32 %v837, %v838
        %v840 = vsel %vm756, %v831, 0.0
        %v841 = vadd.f32 %v839, %v840
        %v842 = vsel %vm756, %v832, 0.0
        %v843 = vadd.f32 %v841, %v842
        %v844 = vsel %vm756, %v833, 0.0
        %v845 = vadd.f32 %v843, %v844
        %v846 = vsel %vm756, %v834, 0.0
        %v847 = vadd.f32 %v845, %v846
        %v848 = vsel %vm756, %v835, 0.0
        %v849 = vadd.f32 %v847, %v848
        %v850 = vsel %vm756, %v836, 0.0
        %v851 = vadd.f32 %v849, %v850
        %852 = vadd.xlane.f32.xlu0 %v851
        %v853 = vpop.xlane.xlu0 %852
        %v854 = vrot.slane %v853, 4
        %v855 = vadd.f32 %v853, %v854
        %v856 = vrot.slane %v855, 2
        %v857 = vadd.f32 %v855, %v856
        %v858 = vrot.slane %v857, 1
        %v859 = vadd.f32 %v857, %v858
        %s860 = vtos %v859
        %v861 = vld [vmem:[%s616] sm:$0xff]
        %v862 = vld [vmem:[%s616 + $0x8] sm:$0xff]
        %863 = vxpose.xlu0.b32.start [1/16] %v861, 128
        %864 = vxpose.xlu0.b32.cont [2/16] 0.0, 128
        %865 = vxpose.xlu0.b32.cont [3/16] 0.0, 128
        %866 = vxpose.xlu0.b32.cont [4/16] 0.0, 128
        %867 = vxpose.xlu0.b32.cont [5/16] 0.0, 128
        %868 = vxpose.xlu0.b32.cont [6/16] 0.0, 128
        %869 = vxpose.xlu0.b32.cont [7/16] 0.0, 128
        %870 = vxpose.xlu0.b32.cont [8/16] 0.0, 128
        %871 = vxpose.xlu0.b32.cont [9/16] 0.0, 128
        %872 = vxpose.xlu0.b32.cont [10/16] 0.0, 128
        %873 = vxpose.xlu0.b32.cont [11/16] 0.0, 128
        %874 = vxpose.xlu0.b32.cont [12/16] 0.0, 128
        %875 = vxpose.xlu0.b32.cont [13/16] 0.0, 128
        %876 = vxpose.xlu0.b32.cont [14/16] 0.0, 128
        %877 = vxpose.xlu0.b32.cont [15/16] 0.0, 128
        %878 = vxpose.xlu0.b32.end [16/16] 0.0, 128
        %v879 = vpop.trf.xlu0
        %v880 = vpop.trf.xlu0
        %v881 = vpop.trf.xlu0
        %v882 = vpop.trf.xlu0
        %v883 = vpop.trf.xlu0
        %v884 = vpop.trf.xlu0
        %v885 = vpop.trf.xlu0
        %v886 = vpop.trf.xlu0
        %v887 = vpop.trf.xlu0
        %v888 = vpop.trf.xlu0
        %v889 = vpop.trf.xlu0
        %v890 = vpop.trf.xlu0
        %v891 = vpop.trf.xlu0
        %v892 = vpop.trf.xlu0
        %v893 = vpop.trf.xlu0
        %v894 = vpop.trf.xlu0
        %895 = vxpose.xlu0.b32.start [1/16] %v862, 128
        %896 = vxpose.xlu0.b32.cont [2/16] 0.0, 128
        %897 = vxpose.xlu0.b32.cont [3/16] 0.0, 128
        %898 = vxpose.xlu0.b32.cont [4/16] 0.0, 128
        %899 = vxpose.xlu0.b32.cont [5/16] 0.0, 128
        %900 = vxpose.xlu0.b32.cont [6/16] 0.0, 128
        %901 = vxpose.xlu0.b32.cont [7/16] 0.0, 128
        %902 = vxpose.xlu0.b32.cont [8/16] 0.0, 128
        %903 = vxpose.xlu0.b32.cont [9/16] 0.0, 128
        %904 = vxpose.xlu0.b32.cont [10/16] 0.0, 128
        %905 = vxpose.xlu0.b32.cont [11/16] 0.0, 128
        %906 = vxpose.xlu0.b32.cont [12/16] 0.0, 128
        %907 = vxpose.xlu0.b32.cont [13/16] 0.0, 128
        %908 = vxpose.xlu0.b32.cont [14/16] 0.0, 128
        %909 = vxpose.xlu0.b32.cont [15/16] 0.0, 128
        %910 = vxpose.xlu0.b32.end [16/16] 0.0, 128
        %v911 = vpop.trf.xlu0
        %v912 = vpop.trf.xlu0
        %v913 = vpop.trf.xlu0
        %v914 = vpop.trf.xlu0
        %v915 = vpop.trf.xlu0
        %v916 = vpop.trf.xlu0
        %v917 = vpop.trf.xlu0
        %v918 = vpop.trf.xlu0
        %v919 = vpop.trf.xlu0
        %v920 = vpop.trf.xlu0
        %v921 = vpop.trf.xlu0
        %v922 = vpop.trf.xlu0
        %v923 = vpop.trf.xlu0
        %v924 = vpop.trf.xlu0
        %v925 = vpop.trf.xlu0
        %v926 = vpop.trf.xlu0
        %v927 = vsub.f32 %v879, %v673
        %v928 = vsub.f32 %v880, %v674
        %v929 = vsub.f32 %v881, %v675
        %v930 = vsub.f32 %v882, %v676
        %v931 = vsub.f32 %v911, %v677
        %v932 = vsub.f32 %v912, %v678
        %v933 = vsub.f32 %v913, %v679
        %v934 = vsub.f32 %v914, %v680
        %v935 = vmul.f32 %v927, %v927
        %v936 = vmul.f32 %v928, %v928
        %v937 = vmul.f32 %v929, %v929
        %v938 = vmul.f32 %v930, %v930
        %v939 = vmul.f32 %v931, %v931
        %v940 = vmul.f32 %v932, %v932
        %v941 = vmul.f32 %v933, %v933
        %v942 = vmul.f32 %v934, %v934
        %v943 = vsel %vm723, %v935, 0.0
        %944 = vadd.xlane.f32.xlu0 %v943
        %v945 = vpop.xlane.xlu0 %944
        %v946 = vsel %vm723, %v936, 0.0
        %947 = vadd.xlane.f32.xlu0 %v946
        %v948 = vpop.xlane.xlu0 %947
        %v949 = vsel %vm723, %v937, 0.0
        %950 = vadd.xlane.f32.xlu0 %v949
        %v951 = vpop.xlane.xlu0 %950
        %v952 = vsel %vm723, %v938, 0.0
        %953 = vadd.xlane.f32.xlu0 %v952
        %v954 = vpop.xlane.xlu0 %953
        %v955 = vsel %vm723, %v939, 0.0
        %956 = vadd.xlane.f32.xlu0 %v955
        %v957 = vpop.xlane.xlu0 %956
        %v958 = vsel %vm723, %v940, 0.0
        %959 = vadd.xlane.f32.xlu0 %v958
        %v960 = vpop.xlane.xlu0 %959
        %v961 = vsel %vm723, %v941, 0.0
        %962 = vadd.xlane.f32.xlu0 %v961
        %v963 = vpop.xlane.xlu0 %962
        %v964 = vsel %vm723, %v942, 0.0
        %965 = vadd.xlane.f32.xlu0 %v964
        %v966 = vpop.xlane.xlu0 %965
        %v967 = vsel %vm691, %v945, 0.0
        %v968 = vsel %vm692, %v948, 0.0
        %v969 = vsel %vm693, %v951, 0.0
        %v970 = vsel %vm694, %v954, 0.0
        %v971 = vsel %vm695, %v957, 0.0
        %v972 = vsel %vm696, %v960, 0.0
        %v973 = vsel %vm697, %v963, 0.0
        %v974 = vsel %vm698, %v966, 0.0
        %v975 = vsel %vm756, %v967, 0.0
        %v976 = vsel %vm756, %v968, 0.0
        %v977 = vadd.f32 %v975, %v976
        %v978 = vsel %vm756, %v969, 0.0
        %v979 = vadd.f32 %v977, %v978
        %v980 = vsel %vm756, %v970, 0.0
        %v981 = vadd.f32 %v979, %v980
        %v982 = vsel %vm756, %v971, 0.0
        %v983 = vadd.f32 %v981, %v982
        %v984 = vsel %vm756, %v972, 0.0
        %v985 = vadd.f32 %v983, %v984
        %v986 = vsel %vm756, %v973, 0.0
        %v987 = vadd.f32 %v985, %v986
        %v988 = vsel %vm756, %v974, 0.0
        %v989 = vadd.f32 %v987, %v988
        %990 = vadd.xlane.f32.xlu0 %v989
        %v991 = vpop.xlane.xlu0 %990
        %v992 = vrot.slane %v991, 4
        %v993 = vadd.f32 %v991, %v992
        %v994 = vrot.slane %v993, 2
        %v995 = vadd.f32 %v993, %v994
        %v996 = vrot.slane %v995, 1
        %v997 = vadd.f32 %v995, %v996
        %s998 = vtos %v997
        %v999 = vld [vmem:[%s627] sm:$0xff]
        %v1000 = vld [vmem:[%s627 + $0x8] sm:$0xff]
        %v1001 = vld [vmem:[%s627 + $0x10] sm:$0xff]
        %v1002 = vld [vmem:[%s627 + $0x18] sm:$0xff]
        %v1003 = vld [vmem:[%s627 + $0x20] sm:$0xff]
        %v1004 = vld [vmem:[%s627 + $0x28] sm:$0xff]
        %v1005 = vld [vmem:[%s627 + $0x30] sm:$0xff]
        %v1006 = vld [vmem:[%s627 + $0x38] sm:$0xff]
        %v1007 = vld [vmem:[%s639] sm:$0xff]
        %v1008 = vld [vmem:[%s639 + $0x8] sm:$0xff]
        %v1009 = vld [vmem:[%s639 + $0x10] sm:$0xff]
        %v1010 = vld [vmem:[%s639 + $0x18] sm:$0xff]
        %v1011 = vld [vmem:[%s639 + $0x20] sm:$0xff]
        %v1012 = vld [vmem:[%s639 + $0x28] sm:$0xff]
        %v1013 = vld [vmem:[%s639 + $0x30] sm:$0xff]
        %v1014 = vld [vmem:[%s639 + $0x38] sm:$0xff]
        %v1015 = vsub.f32 %v999, %v1007
        %v1016 = vsub.f32 %v1000, %v1008
        %v1017 = vsub.f32 %v1001, %v1009
        %v1018 = vsub.f32 %v1002, %v1010
        %v1019 = vsub.f32 %v1003, %v1011
        %v1020 = vsub.f32 %v1004, %v1012
        %v1021 = vsub.f32 %v1005, %v1013
        %v1022 = vsub.f32 %v1006, %v1014
        %v1023 = vand.u32 2147483647, %v1015
        %v1024 = vand.u32 2147483647, %v1016
        %v1025 = vand.u32 2147483647, %v1017
        %v1026 = vand.u32 2147483647, %v1018
        %v1027 = vand.u32 2147483647, %v1019
        %v1028 = vand.u32 2147483647, %v1020
        %v1029 = vand.u32 2147483647, %v1021
        %v1030 = vand.u32 2147483647, %v1022
        %v1031 = vsel %vm723, %v1023, 0.0
        %1032 = vadd.xlane.f32.xlu0 %v1031
        %v1033 = vpop.xlane.xlu0 %1032
        %v1034 = vsel %vm723, %v1024, 0.0
        %1035 = vadd.xlane.f32.xlu0 %v1034
        %v1036 = vpop.xlane.xlu0 %1035
        %v1037 = vsel %vm723, %v1025, 0.0
        %1038 = vadd.xlane.f32.xlu0 %v1037
        %v1039 = vpop.xlane.xlu0 %1038
        %v1040 = vsel %vm723, %v1026, 0.0
        %1041 = vadd.xlane.f32.xlu0 %v1040
        %v1042 = vpop.xlane.xlu0 %1041
        %v1043 = vsel %vm723, %v1027, 0.0
        %1044 = vadd.xlane.f32.xlu0 %v1043
        %v1045 = vpop.xlane.xlu0 %1044
        %v1046 = vsel %vm723, %v1028, 0.0
        %1047 = vadd.xlane.f32.xlu0 %v1046
        %v1048 = vpop.xlane.xlu0 %1047
        %v1049 = vsel %vm723, %v1029, 0.0
        %1050 = vadd.xlane.f32.xlu0 %v1049
        %v1051 = vpop.xlane.xlu0 %1050
        %v1052 = vsel %vm723, %v1030, 0.0
        %1053 = vadd.xlane.f32.xlu0 %v1052
        %v1054 = vpop.xlane.xlu0 %1053
        %vm1055 = vcmp.lt.s32.totalorder %v687, 32
        %vm1056 = vcmp.lt.s32.totalorder %v688, 32
        %vm1057 = vcmp.lt.s32.totalorder %v689, 32
        %vm1058 = vcmp.lt.s32.totalorder %v690, 32
        %v1059 = vsel %vm1055, %v1033, 0.0
        %v1060 = vsel %vm1056, %v1036, 0.0
        %v1061 = vsel %vm1057, %v1039, 0.0
        %v1062 = vsel %vm1058, %v1042, 0.0
        %v1063 = vsel %vm1055, %v1045, 0.0
        %v1064 = vsel %vm1056, %v1048, 0.0
        %v1065 = vsel %vm1057, %v1051, 0.0
        %v1066 = vsel %vm1058, %v1054, 0.0
        %v1067 = vsel %vm756, %v1059, 0.0
        %v1068 = vsel %vm756, %v1060, 0.0
        %v1069 = vadd.f32 %v1067, %v1068
        %v1070 = vsel %vm756, %v1061, 0.0
        %v1071 = vadd.f32 %v1069, %v1070
        %v1072 = vsel %vm756, %v1062, 0.0
        %v1073 = vadd.f32 %v1071, %v1072
        %v1074 = vsel %vm756, %v1063, 0.0
        %v1075 = vadd.f32 %v1073, %v1074
        %v1076 = vsel %vm756, %v1064, 0.0
        %v1077 = vadd.f32 %v1075, %v1076
        %v1078 = vsel %vm756, %v1065, 0.0
        %v1079 = vadd.f32 %v1077, %v1078
        %v1080 = vsel %vm756, %v1066, 0.0
        %v1081 = vadd.f32 %v1079, %v1080
        %1082 = vadd.xlane.f32.xlu0 %v1081
        %v1083 = vpop.xlane.xlu0 %1082
        %v1084 = vrot.slane %v1083, 4
        %v1085 = vadd.f32 %v1083, %v1084
        %v1086 = vrot.slane %v1085, 2
        %v1087 = vadd.f32 %v1085, %v1086
        %v1088 = vrot.slane %v1087, 1
        %v1089 = vadd.f32 %v1087, %v1088
        %s1090 = vtos %v1089
        %s1091 = sld [smem:[#allocation2]]
        %s1092 = sadd.f32 %s1091, %s780
        %s1093 = scalar_lea.smem [#allocation2], 0
        %1094 = sst [smem:[%s1093]] %s1092
        %s1095 = sld [smem:[#allocation2 + $0x1]]
        %s1096 = sadd.f32 %s1095, %s860
        %s1097 = scalar_lea.smem [#allocation2], 1
        %1098 = sst [smem:[%s1097]] %s1096
        %s1099 = sld [smem:[#allocation2 + $0x2]]
        %s1100 = sadd.f32 %s1099, %s998
        %s1101 = scalar_lea.smem [#allocation2], 2
        %1102 = sst [smem:[%s1101]] %s1100
        %s1103 = sld [smem:[#allocation2 + $0x4]]
        %s1104 = sadd.f32 %s1103, %s1090
        %s1105 = scalar_lea.smem [#allocation2], 4
        %1106 = sst [smem:[%s1105]] %s1104
        %v1107 = vlaneseq
        %v1108 = vand.u32 %v1107, 127
        %vm1109 = vcmp.lt.s32.totalorder %v1108, %v650
        %vm1110 = vcmp.lt.s32.totalorder %v1108, %v652
        %v1111 = vsel %vm691, 1, 0
        %v1112 = vsel %vm692, 1, 0
        %v1113 = vsel %vm693, 1, 0
        %v1114 = vsel %vm694, 1, 0
        %v1115 = vsel %vm695, 1, 0
        %v1116 = vsel %vm696, 1, 0
        %v1117 = vsel %vm697, 1, 0
        %v1118 = vsel %vm698, 1, 0
        %vm1119 = vcmp.eq.s32.totalorder %v1111, 1
        %vm1120 = vcmp.eq.s32.totalorder %v1112, 1
        %vm1121 = vcmp.eq.s32.totalorder %v1113, 1
        %vm1122 = vcmp.eq.s32.totalorder %v1114, 1
        %vm1123 = vcmp.eq.s32.totalorder %v1115, 1
        %vm1124 = vcmp.eq.s32.totalorder %v1116, 1
        %vm1125 = vcmp.eq.s32.totalorder %v1117, 1
        %vm1126 = vcmp.eq.s32.totalorder %v1118, 1
        %v1127 = vsel %vm1109, 1, 0
        %v1128 = vsel %vm1110, 1, 0
        %vm1129 = vcmp.eq.s32.totalorder %v1127, 1
        %vm1130 = vcmp.eq.s32.totalorder %v1128, 1
        %vm1131 = vmand %vm1119, %vm1129
        %vm1132 = vmand %vm1120, %vm1129
        %vm1133 = vmand %vm1121, %vm1129
        %vm1134 = vmand %vm1122, %vm1129
        %vm1135 = vmand %vm1123, %vm1130
        %vm1136 = vmand %vm1124, %vm1130
        %vm1137 = vmand %vm1125, %vm1130
        %vm1138 = vmand %vm1126, %vm1130
        %v1139 = vcvt.s32.f32 %v645
        %v1140 = vcvt.s32.f32 %v648
        %v1141 = vrcp.pop %v1139
        %v1142 = vmul.f32 1.0, %v1141
        %v1143 = vrcp.pop %v1140
        %v1144 = vmul.f32 1.0, %v1143
        %v1145 = vcvt.s32.f32 %v650
        %v1146 = vcvt.s32.f32 %v652
        %v1147 = vrcp.pop %v1145
        %v1148 = vmul.f32 1.0, %v1147
        %v1149 = vrcp.pop %v1146
        %v1150 = vmul.f32 1.0, %v1149
        %v1151 = vcvt.s32.f32 %v1108
        %v1152 = vmul.f32 %v1151, %v1148
        %v1153 = vmul.f32 %v1151, %v1150
        %v1154 = vcvt.s32.f32 %v687
        %v1155 = vcvt.s32.f32 %v688
        %v1156 = vcvt.s32.f32 %v689
        %v1157 = vcvt.s32.f32 %v690
        %v1158 = vmul.f32 %v1154, %v1142
        %v1159 = vmul.f32 %v1155, %v1142
        %v1160 = vmul.f32 %v1156, %v1142
        %v1161 = vmul.f32 %v1157, %v1142
        %v1162 = vmul.f32 %v1154, %v1144
        %v1163 = vmul.f32 %v1155, %v1144
        %v1164 = vmul.f32 %v1156, %v1144
        %v1165 = vmul.f32 %v1157, %v1144
        %v1166 = vsub.f32 %v1152, %v1158
        %v1167 = vsub.f32 %v1152, %v1159
        %v1168 = vsub.f32 %v1152, %v1160
        %v1169 = vsub.f32 %v1152, %v1161
        %v1170 = vsub.f32 %v1153, %v1162
        %v1171 = vsub.f32 %v1153, %v1163
        %v1172 = vsub.f32 %v1153, %v1164
        %v1173 = vsub.f32 %v1153, %v1165
        %v1174 = vmul.f32 %v1166, %v1166
        %v1175 = vmul.f32 %v1167, %v1167
        %v1176 = vmul.f32 %v1168, %v1168
        %v1177 = vmul.f32 %v1169, %v1169
        %v1178 = vmul.f32 %v1170, %v1170
        %v1179 = vmul.f32 %v1171, %v1171
        %v1180 = vmul.f32 %v1172, %v1172
        %v1181 = vmul.f32 %v1173, %v1173
        %v1182 = vsub.f32 0.0, %v1174
        %v1183 = vsub.f32 0.0, %v1175
        %v1184 = vsub.f32 0.0, %v1176
        %v1185 = vsub.f32 0.0, %v1177
        %v1186 = vsub.f32 0.0, %v1178
        %v1187 = vsub.f32 0.0, %v1179
        %v1188 = vsub.f32 0.0, %v1180
        %v1189 = vsub.f32 0.0, %v1181
        %v1190 = vmul.f32 %v1182, 200.0
        %v1191 = vmul.f32 %v1183, 200.0
        %v1192 = vmul.f32 %v1184, 200.0
        %v1193 = vmul.f32 %v1185, 200.0
        %v1194 = vmul.f32 %v1186, 200.0
        %v1195 = vmul.f32 %v1187, 200.0
        %v1196 = vmul.f32 %v1188, 200.0
        %v1197 = vmul.f32 %v1189, 200.0
        %v1198 = vmul.f32 %v1190, 1.442695
        %v1199 = vpow.pop %v1198
        %v1200 = vmul.f32 %v1191, 1.442695
        %v1201 = vpow.pop %v1200
        %v1202 = vmul.f32 %v1192, 1.442695
        %v1203 = vpow.pop %v1202
        %v1204 = vmul.f32 %v1193, 1.442695
        %v1205 = vpow.pop %v1204
        %v1206 = vmul.f32 %v1194, 1.442695
        %v1207 = vpow.pop %v1206
        %v1208 = vmul.f32 %v1195, 1.442695
        %v1209 = vpow.pop %v1208
        %v1210 = vmul.f32 %v1196, 1.442695
        %v1211 = vpow.pop %v1210
        %v1212 = vmul.f32 %v1197, 1.442695
        %v1213 = vpow.pop %v1212
        %v1214 = vsub.f32 1.0, %v1199
        %v1215 = vsub.f32 1.0, %v1201
        %v1216 = vsub.f32 1.0, %v1203
        %v1217 = vsub.f32 1.0, %v1205
        %v1218 = vsub.f32 1.0, %v1207
        %v1219 = vsub.f32 1.0, %v1209
        %v1220 = vsub.f32 1.0, %v1211
        %v1221 = vsub.f32 1.0, %v1213
        %v1222 = vmul.f32 %v1214, %v999
        %v1223 = vmul.f32 %v1215, %v1000
        %v1224 = vmul.f32 %v1216, %v1001
        %v1225 = vmul.f32 %v1217, %v1002
        %v1226 = vmul.f32 %v1218, %v1003
        %v1227 = vmul.f32 %v1219, %v1004
        %v1228 = vmul.f32 %v1220, %v1005
        %v1229 = vmul.f32 %v1221, %v1006
        %v1230 = vsel %vm1131, %v1222, 0.0
        %v1231 = vsel %vm1132, %v1223, 0.0
        %v1232 = vsel %vm1133, %v1224, 0.0
        %v1233 = vsel %vm1134, %v1225, 0.0
        %v1234 = vsel %vm1135, %v1226, 0.0
        %v1235 = vsel %vm1136, %v1227, 0.0
        %v1236 = vsel %vm1137, %v1228, 0.0
        %v1237 = vsel %vm1138, %v1229, 0.0
        %v1238 = vsel %vm723, %v1230, 0.0
        %v1239 = vsel %vm723, %v1231, 0.0
        %v1240 = vadd.f32 %v1238, %v1239
        %v1241 = vsel %vm723, %v1232, 0.0
        %v1242 = vadd.f32 %v1240, %v1241
        %v1243 = vsel %vm723, %v1233, 0.0
        %v1244 = vadd.f32 %v1242, %v1243
        %v1245 = vsel %vm723, %v1234, 0.0
        %v1246 = vadd.f32 %v1244, %v1245
        %v1247 = vsel %vm723, %v1235, 0.0
        %v1248 = vadd.f32 %v1246, %v1247
        %v1249 = vsel %vm723, %v1236, 0.0
        %v1250 = vadd.f32 %v1248, %v1249
        %v1251 = vsel %vm723, %v1237, 0.0
        %v1252 = vadd.f32 %v1250, %v1251
        %1253 = vadd.xlane.f32.xlu0 %v1252
        %v1254 = vpop.xlane.xlu0 %1253
        %v1255 = vrot.slane %v1254, 4
        %v1256 = vadd.f32 %v1254, %v1255
        %v1257 = vrot.slane %v1256, 2
        %v1258 = vadd.f32 %v1256, %v1257
        %v1259 = vrot.slane %v1258, 1
        %v1260 = vadd.f32 %v1258, %v1259
        %s1261 = vtos %v1260
        %v1262 = vsub.s32 %v645, %v686
        %v1263 = vsub.s32 %v648, %v686
        %vm1264 = vcmp.gt.s32.totalorder %v1262, 0
        %v1265 = vsel %vm1264, %v1262, 0
        %vm1266 = vcmp.gt.s32.totalorder %v1263, 0
        %v1267 = vsel %vm1266, %v1263, 0
        %vm1268 = vcmp.lt.s32.totalorder %v1265, 32
        %v1269 = vsel %vm1268, %v1265, 32
        %vm1270 = vcmp.lt.s32.totalorder %v1267, 32
        %v1271 = vsel %vm1270, %v1267, 32
        %v1272 = vmul.u32 %v1269, %v650
        %v1273 = vmul.u32 %v1271, %v652
        %v1274 = vcvt.s32.f32 %v1272
        %v1275 = vcvt.s32.f32 %v1273
        %vm1276 = vcmask 0
        %v1277 = vsel %vm1276, %v1274, 0.0
        %v1278 = vsel %vm1276, %v1275, 0.0
        %v1279 = vadd.f32 %v1277, %v1278
        %1280 = vadd.xlane.f32.xlu0 %v1279
        %v1281 = vpop.xlane.xlu0 %1280
        %v1282 = vrot.slane %v1281, 4
        %v1283 = vadd.f32 %v1281, %v1282
        %v1284 = vrot.slane %v1283, 2
        %v1285 = vadd.f32 %v1283, %v1284
        %v1286 = vrot.slane %v1285, 1
        %v1287 = vadd.f32 %v1285, %v1286
        %s1288 = vtos %v1287
        %s1289 = sld [smem:[#allocation2 + $0x5]]
        %s1290 = sadd.f32 %s1289, %s1261
        %s1291 = scalar_lea.smem [#allocation2], 5
        %1292 = sst [smem:[%s1291]] %s1290
        %s1293 = sld [smem:[#allocation2 + $0x6]]
        %s1294 = sadd.f32 %s1293, %s1288
        %s1295 = scalar_lea.smem [#allocation2], 6
        %1296 = sst [smem:[%s1295]] %s1294
        %p1297 = scmp.eq.s32.totalorder %s31, 0
        %p1298 = pnand %p1297, %p653
        %p1299 = pneg %p1298
        // Predicated region
        $region77: #{tpu_custom_call.1} parent=63 // pred_check
          _
        $region78: #{tpu_custom_call.1} parent=63 // pred_check_branch
          %1301 = sbr.rel (%p1298) target = $region80
        $region79: #{tpu_custom_call.1} parent=63 // pred_region
          %v1302 = vld [vmem:[%s6] sm:$0xf]
          %v1303 = vld [vmem:[%s7] sm:$0xf]
          %v1304 = vld [vmem:[%s8] sm:$0xf]
          %1305 = vset.pattern.permute.xlu0 0
          %1306 = vperm.xlu0 %1305, %v1304
          %v1307 = vpop.permute.xlu0 %1306
          %vm1308 = vcmp.lt.s32.totalorder %v1108, %v1307
          %v1309 = vsel %vm1308, %v1302, 0.0
          %v1310 = vsel %vm1308, %v1303, 0.0
          %v1311 = vand.u32 2147483647, %v1309
          %v1312 = vsub.f32 0.0, %v1311
          %v1313 = vmul.f32 %v1312, 1.442695
          %v1314 = vpow.pop %v1313
          %v1315 = vadd.f32 %v1314, 1.0
          %v1316 = vlog2.pop %v1315
          %v1317 = vmul.f32 %v1316, 0.6931472
          %v1318 = vmul.f32 -0.5, %v1314
          %v1319 = vadd.f32 %v1318, 1.0
          %v1320 = vmul.f32 %v1319, %v1314
          %v1321 = vand.u32 2147483647, %v1314
          %vm1322 = vcmp.lt.f32.partialorder %v1321, 0.0004427343
          %v1323 = vsel %vm1322, %v1320, %v1317
          %v1324 = vmul.f32 %v1310, 10.0
          %v1325 = vsub.f32 0.0, %v1309
          %v1326 = vmax.f32 %v1325, 0.0
          %v1327 = vadd.f32 %v1326, %v1323
          %v1328 = vmul.f32 %v1324, %v1327
          %v1329 = vsub.f32 1.0, %v1310
          %v1330 = vmax.f32 %v1309, 0.0
          %v1331 = vadd.f32 %v1330, %v1323
          %v1332 = vmul.f32 %v1329, %v1331
          %v1333 = vadd.f32 %v1328, %v1332
          %s1334 = sld [smem:[#allocation2 + $0x3]]
          %vm1335 = vcmask 257024
          %v1336 = vsel %vm1335, %v1333, 0.0
          %1337 = vadd.xlane.f32.xlu0 %v1336
          %v1338 = vpop.xlane.xlu0 %1337
          %v1339 = vrot.slane %v1338, 4
          %v1340 = vadd.f32 %v1338, %v1339
          %v1341 = vrot.slane %v1340, 2
          %v1342 = vadd.f32 %v1340, %v1341
          %v1343 = vrot.slane %v1342, 1
          %v1344 = vadd.f32 %v1342, %v1343
          %s1345 = vtos %v1344
          %s1346 = sadd.f32 %s1334, %s1345
          %s1347 = scalar_lea.smem [#allocation2], 3
          %1348 = sst [smem:[%s1347]] %s1346
        $region80: #{tpu_custom_call.1} parent=63 // pred_fallthru
          _
        // Predicated region
        $region81: #{tpu_custom_call.1} parent=63 // pred_check
          %p1349 = pneg %p653
        $region82: #{tpu_custom_call.1} parent=63 // pred_check_branch
          %1351 = sbr.rel (%p1349) target = $region84
        $region83: #{tpu_custom_call.1} parent=63 // pred_region
          %s1352 = sld [smem:[#allocation2]]
          %v1353 = vstv %s1352
          %s1354 = sld [smem:[#allocation2 + $0x1]]
          %v1355 = vstv %s1354
          %s1356 = sld [smem:[#allocation2 + $0x2]]
          %v1357 = vstv %s1356
          %s1358 = sld [smem:[#allocation2 + $0x3]]
          %v1359 = vstv %s1358
          %s1360 = sld [smem:[#allocation2 + $0x4]]
          %v1361 = vstv %s1360
          %s1362 = sld [smem:[#allocation2 + $0x5]]
          %v1363 = vstv %s1362
          %s1364 = sld [smem:[#allocation2 + $0x6]]
          %v1365 = vstv %s1364
          %s1366 = sld [smem:[#allocation2 + $0x7]]
          %v1367 = vstv %s1366
          %vm1368 = vcmask 1040384
          %v1369 = vsel %vm1368, %v1353, %v1355
          %vm1370 = vcmask 1041408
          %v1371 = vsel %vm1370, %v1369, %v1357
          %vm1372 = vcmask 1042432
          %v1373 = vsel %vm1372, %v1371, %v1359
          %vm1374 = vcmask 1043456
          %v1375 = vsel %vm1374, %v1373, %v1361
          %vm1376 = vcmask 1044480
          %v1377 = vsel %vm1376, %v1375, %v1363
          %vm1378 = vcmask 1045504
          %v1379 = vsel %vm1378, %v1377, %v1365
          %vm1380 = vcmask 1046528
          %v1381 = vsel %vm1380, %v1379, %v1367
          %1382 = vst [vmem:[%s572] sm:$0xff] %v1381
        $region84: #{tpu_custom_call.1} parent=63 // pred_fallthru
          _
        %s1383 = sand.u32 %s320, 1
        %s1384 = scalar_lea.sflag [#allocation4], %s1383
        %s1385 = sand.u32 %s320, 1
        %s1386 = smul.addr %s1385, 8
        %s1387 = scalar_lea.vmem [#allocation8], %s1386
        // Predicated region
        $region85: #{tpu_custom_call.1} parent=63 // pred_check
          %p1388 = pneg %p330
        $region86: #{tpu_custom_call.1} parent=63 // pred_check_branch
          %1390 = sbr.rel (%p1388) target = $region88
        $region87: #{tpu_custom_call.1} parent=63 // pred_region
          %s1392 = ssub.s32 128, 128
          %1393 = vsyncadd %s1384, %s1392
          %s1394 = smul.addr %s31, 128
          %s1395 = scalar_lea.hbm %s11, %s1394
          %s1397 = sshll.u32 %s1387, 4
          %s1398 = int_to_ptr.vmem [resolvable:$true] %s1397
          %1400 = dma.vmem_to_hbm [thread:$0]  %s1398, 128, %s1395, %s1384
        $region88: #{tpu_custom_call.1} parent=63 // pred_fallthru
          _
      $region64: #{tpu_custom_call.1} parent=5 // pred_fallthru
        _
      %p1401 = scmp.le.s32.totalorder 2, %s22
      // Predicated region
      $region89: #{tpu_custom_call.1} parent=5 // pred_check
        %p1402 = pneg %p1401
      $region90: #{tpu_custom_call.1} parent=5 // pred_check_branch
        %1404 = sbr.rel (%p1402) target = $region92
      $region91: #{tpu_custom_call.1} parent=5 // pred_region
        %s1405 = ssub.s32 %s22, 2
        // Predicated region
        $region93: #{tpu_custom_call.1} parent=91 // pred_check
          %p1406 = pneg %p336
        $region94: #{tpu_custom_call.1} parent=91 // pred_check_branch
          %1408 = sbr.rel (%p1406) target = $region96
        $region95: #{tpu_custom_call.1} parent=91 // pred_region
          %s1409 = sand.u32 %s321, 1
          %s1410 = scalar_lea.sflag [#allocation4], %s1409
          %s1411 = sand.u32 %s321, 1
          %s1412 = smul.addr %s1411, 8
          %s1413 = scalar_lea.vmem [#allocation8], %s1412
          %1414 = dma.done %s1410, 128
        $region96: #{tpu_custom_call.1} parent=91 // pred_fallthru
          _
      $region92: #{tpu_custom_call.1} parent=5 // pred_fallthru
        _
    $region6: #{tpu_custom_call.1} parent=1 // loop_footer
      %s26 = sadd.s32 1, %s22
    $region7: #{tpu_custom_call.1} parent=1 // loop_footer_branch
      %21 = sbr.rel target = $region3
    $region8: #{tpu_custom_call.1} parent=1 // loop_exit
      _
    %1415 = vsyncpa [#allocation4], 1
    %s1416 = scalar_lea.sflag [#allocation4], 1
    %1417 = vsyncpa %s1416, 1
    %1418 = vsyncpa [#allocation5], 1
    %s1419 = scalar_lea.sflag [#allocation5], 1
    %1420 = vsyncpa %s1419, 1
    %1421 = vsyncpa [#allocation7], 1

</llo_original>
